<compile_context>
chip_gen: v6e
topology: v6e:2x2x1
jax: 0.10.0
libtpu: 0.0.40
codegen_flags: <defaults>
</compile_context>

<pallas_src>
import functools

import numpy as np

import jax
import jax.numpy as jnp
from jax.experimental import pallas as pl
from jax.experimental.pallas import tpu as pltpu

# ----------------------------- config ---------------------------------------
CFG = dict(
    vocab_size=64,
    embedding_dim=32,
    context_length=8,
    heads=4,
    layers=2,
    droprate=0.0,
    qkv_bias=False,
)


# ----------------------------- fused kernel ---------------------------------
def gpt_fused_kernel(idx_ref, nar_ref, wide_ref, bias_ref, o_ref, *,
                     batch, seq, heads, layers, vocab, ctx_len):
    """Whole GPT forward for a (batch*seq, D) slab, entirely in VMEM."""
    D = nar_ref.shape[1]
    H = heads
    N = batch * seq                 # flattened (batch, seq) rows
    HN = H * N
    VE = vocab + ctx_len            # width of the combined [tok | pos] embedding table
    f32 = jnp.float32
    bf16 = jnp.bfloat16

    # narrow-slab row layout (must match prepare_inputs)
    R_WO = VE                       # per-layer Wo blocks
    R_HM = R_WO + layers * D        # head-column mask
    R_VEC = R_HM + HN               # (1, D) parameter vectors

    # ---------- token + positional embedding in ONE one-hot matmul -----------
    idx = idx_ref[...]                                              # (N, 1) i32
    col = jax.lax.broadcasted_iota(jnp.int32, (N, VE), 1)
    row = jax.lax.broadcasted_iota(jnp.int32, (N, VE), 0)
    onehot = jnp.logical_or(col == idx,                             # token column
                            col == vocab + row % seq)               # position column
    emb = nar_ref[pl.ds(0, VE), :].astype(bf16)                     # [tok_emb ; pos_emb]
    x = jnp.dot(onehot.astype(bf16), emb, preferred_element_type=f32)  # (N, D) f32

    # ---------- precomputed masks (shipped from host, read once) -------------
    head_mask = nar_ref[pl.ds(R_HM, HN), :]                         # (HN, D) 0/1 f32
    attn_bias = bias_ref[...]                                       # (HN, N) 0 / -inf
    vecs = nar_ref[pl.ds(R_VEC, 2 + 5 * layers), :]                 # all (1, D) vectors

    def vec(r):
        return vecs[r:r + 1, :]                                     # (1, D) f32

    def layernorm(z, scale, shift, eps=1e-5):
        mean = jnp.mean(z, axis=-1, keepdims=True)
        var = jnp.mean((z - mean) ** 2, axis=-1, keepdims=True)     # unbiased=False
        return scale * ((z - mean) * jax.lax.rsqrt(var + eps)) + shift

    def attn_residual(z, scale, shift, w_qkv, wo, bo):
        """z + out_proj(causal_mha(layernorm(z))) for the whole (N, D) slab."""
        zn = layernorm(z, scale, shift)
        # fused QKV projection (Wq pre-scaled by 1/sqrt(head_dim) on the host)
        qkv = jnp.dot(zn.astype(bf16), w_qkv, preferred_element_type=f32)  # (N, 128)
        q = qkv[:, 0:D]
        k = qkv[:, D:2 * D]
        v = qkv[:, 2 * D:3 * D]

        # All heads stacked along rows: row h*N+n holds q[n] restricted to head
        # h's columns, so one contraction over D gives every head's scores.
        q_big = jnp.concatenate([q] * H, axis=0) * head_mask        # (HN, D)
        scores = jax.lax.dot_general(q_big.astype(bf16), k.astype(bf16),
                                     (((1,), (1,)), ((), ())),
                                     preferred_element_type=f32)    # (HN, N)
        scores = scores + attn_bias                                 # causal + same-sample
        scores = scores - jnp.max(scores, axis=-1, keepdims=True)
        p = jnp.exp(scores)
        p = p * pl.reciprocal(jnp.sum(p, axis=-1, keepdims=True), approx=True)

        # One context matmul for all heads, then fold the H row-blocks back to
        # (N, D): the head mask keeps exactly head h's columns in block h.
        ctx_big = jnp.dot(p.astype(bf16), v.astype(bf16),
                          preferred_element_type=f32) * head_mask   # (HN, D)
        ctx = ctx_big[0:N, :]
        for h in range(1, H):
            ctx = ctx + ctx_big[h * N:(h + 1) * N, :]               # (N, D)

        out = jnp.dot(ctx.astype(bf16), wo, preferred_element_type=f32) + bo
        return z + out

    # ---------- transformer blocks (attn applied twice; self.ff unused) ------
    for l in range(layers):
        w_qkv = wide_ref[pl.ds(l * D, D), :]                        # (D, 128) bf16
        wo = nar_ref[pl.ds(R_WO + l * D, D), :].astype(bf16)        # (D, D)
        base = 2 + 5 * l
        bo = vec(base + 4)
        x = attn_residual(x, vec(base + 0), vec(base + 1), w_qkv, wo, bo)
        x = attn_residual(x, vec(base + 2), vec(base + 3), w_qkv, wo, bo)

    # ---------- final norm + lane-dense (padded) logit head ------------------
    xn = layernorm(x, vec(0), vec(1))
    w_out = wide_ref[pl.ds(layers * D, D), :]                       # (D, 128) bf16
    o_ref[...] = jnp.dot(xn.astype(bf16), w_out,
                         preferred_element_type=f32).astype(o_ref.dtype)


# ----------------------------- host-side packing ------------------------------
def prepare_inputs(params, cfg, batch, seq):
    """Pack weights + static masks into 3 slabs.  Run ONCE, outside the jitted path."""
    D = cfg["embedding_dim"]
    V = cfg["vocab_size"]
    C = cfg["context_length"]
    H = cfg["heads"]
    L = cfg["layers"]
    hd = D // H
    N = batch * seq
    HN = H * N
    VP = ((V + 127) // 128) * 128
    assert D % H == 0 and 3 * D <= VP and seq <= C

    # head-column mask for the "heads stacked along rows" layout (static)
    head_mask = (np.arange(HN)[:, None] // N ==
                 np.arange(D)[None, :] // hd).astype(np.float32)

    # causal + same-sample additive mask on the (HN, N) score matrix (static)
    qn = np.arange(HN)[:, None] % N
    km = np.arange(N)[None, :]
    ok = (qn // seq == km // seq) & (km % seq <= qn % seq)
    attn_bias = np.where(ok, 0.0, -np.inf).astype(np.float32)

    # narrow slab (f32, width D): [tok_emb | pos_emb | Wo_l ... | head_mask | vectors]
    rows = [params["tok_emb"], params["pos_emb"]]
    rows += [blk["wo"] for blk in params["blocks"]]
    rows.append(jnp.asarray(head_mask))
    rows += [params["final_scale"], params["final_shift"]]
    for blk in params["blocks"]:
        rows += [blk["norm1_scale"], blk["norm1_shift"],
                 blk["norm2_scale"], blk["norm2_shift"], blk["bo"]]
    narrow = jnp.concatenate(rows, axis=0).astype(jnp.float32)

    # wide slab (bf16, width 128): per layer [Wq/sqrt(hd) | Wk | Wv | 0-pad], then padded W_out
    inv = np.float32(1.0 / np.sqrt(hd))
    wrows = []
    for blk in params["blocks"]:
        qkv = jnp.concatenate([blk["wq"] * inv, blk["wk"], blk["wv"]], axis=1)
        wrows.append(jnp.pad(qkv, ((0, 0), (0, VP - 3 * D))))
    wrows.append(jnp.pad(params["w_out"], ((0, 0), (0, VP - V))))
    wide = jnp.concatenate(wrows, axis=0).astype(jnp.bfloat16)

    return dict(narrow=narrow, wide=wide, bias=jnp.asarray(attn_bias))


# ----------------------------- wrapper ---------------------------------------
def gpt_forward(prep, in_idx, cfg):
    B, S = in_idx.shape
    V = cfg["vocab_size"]
    N = B * S
    VP = ((V + 127) // 128) * 128

    idx = in_idx.reshape(N, 1).astype(jnp.int32)
    vmem = pl.BlockSpec(memory_space=pltpu.MemorySpace.VMEM)
    out = pl.pallas_call(
        functools.partial(gpt_fused_kernel, batch=B, seq=S,
                          heads=cfg["heads"], layers=cfg["layers"],
                          vocab=V, ctx_len=cfg["context_length"]),
        out_shape=jax.ShapeDtypeStruct((N, VP), jnp.float32),
        in_specs=[vmem] * 4,
        out_specs=vmem,
    )(idx, prep["narrow"], prep["wide"], prep["bias"])
    return out.reshape(B, S, VP)[:, :, :V]


# ----------------------------- params ----------------------------------------
def init_params(cfg, key):
    D = cfg["embedding_dim"]
    V = cfg["vocab_size"]
    C = cfg["context_length"]
    L = cfg["layers"]
    ks = jax.random.split(key, 4 + 5 * L)
    i = 0

    def nrm(k, shape, s=0.02):
        return (s * jax.random.normal(k, shape)).astype(jnp.float32)

    params = {
        "tok_emb": nrm(ks[i], (V, D)),
        "pos_emb": nrm(ks[i + 1], (C, D)),
        "final_scale": jnp.ones((1, D), jnp.float32),
        "final_shift": jnp.zeros((1, D), jnp.float32),
        "w_out": nrm(ks[i + 2], (D, V)),
        "blocks": [],
    }
    i += 3
    for _ in range(L):
        blk = {
            "norm1_scale": jnp.ones((1, D), jnp.float32),
            "norm1_shift": jnp.zeros((1, D), jnp.float32),
            "norm2_scale": jnp.ones((1, D), jnp.float32),
            "norm2_shift": jnp.zeros((1, D), jnp.float32),
            "wq": nrm(ks[i], (D, D)),
            "wk": nrm(ks[i + 1], (D, D)),
            "wv": nrm(ks[i + 2], (D, D)),
            "wo": nrm(ks[i + 3], (D, D)),
            "bo": jnp.zeros((1, D), jnp.float32),   # out_proj bias
            # FeedForward weights exist in the PyTorch module but self.ff is
            # never invoked in TransformerBlock.forward, so they are omitted.
        }
        params["blocks"].append(blk)
        i += 4
    return params


# ----------------------------- main -------------------------------------------
if __name__ == "__main__":
    key = jax.random.PRNGKey(0)
    pkey, ikey = jax.random.split(key)
    params = init_params(CFG, pkey)

    B, S = 2, CFG["context_length"]
    in_idx = jax.random.randint(ikey, (B, S), 0, CFG["vocab_size"],
                                dtype=jnp.int32)

    prep = prepare_inputs(params, CFG, B, S)   # slab packing amortized outside jit
    fwd = jax.jit(lambda pr, i: gpt_forward(pr, i, CFG))
    # TODO(synk): dropout with p>0 (training mode) not implemented; identity here.
    logits = jax.block_until_ready(fwd(prep, in_idx))

    assert logits.shape == (B, S, CFG["vocab_size"]), logits.shape
    assert bool(jnp.all(jnp.isfinite(logits)))
    print("KERNEL_OK")
</pallas_src>

<mosaic_0001>
module attributes {stable_mosaic.version = 11 : i64} {
  func.func @gpt_fused_kernel(%arg0: memref<16x1xi32, #tpu.memory_space<vmem>>, %arg1: memref<212x32xf32, #tpu.memory_space<vmem>>, %arg2: memref<96x128xbf16, #tpu.memory_space<vmem>>, %arg3: memref<64x16xf32, #tpu.memory_space<vmem>>, %arg4: memref<16x128xf32, #tpu.memory_space<vmem>>) attributes {dimension_semantics = [], scalar_prefetch = 0 : i64, scratch_operands = 0 : i64, tpu.core_type = #tpu.core_type<tc>} {
    %c0 = arith.constant 0 : index
    %c0_0 = arith.constant 0 : index
    %0 = vector.load %arg0[%c0, %c0_0] : memref<16x1xi32, #tpu.memory_space<vmem>>, vector<16x1xi32>
    %1 = tpu.iota {dimensions = array<i32: 1>} : vector<16x72xi32>
    %2 = tpu.iota {dimensions = array<i32: 0>} : vector<16x72xi32>
    %3 = vector.broadcast %0 : vector<16x1xi32> to vector<16x72xi32>
    %4 = arith.cmpi eq, %1, %3 : vector<16x72xi32>
    %c8_i32 = arith.constant 8 : i32
    %c0_i32 = arith.constant 0 : i32
    %5 = arith.cmpi eq, %c8_i32, %c0_i32 : i32
    %c1_i32 = arith.constant 1 : i32
    %6 = arith.select %5, %c1_i32, %c8_i32 : i32
    %7 = vector.broadcast %6 : i32 to vector<16x72xi32>
    %8 = arith.remsi %2, %7 : vector<16x72xi32>
    %c0_i32_1 = arith.constant 0 : i32
    %9 = vector.broadcast %c0_i32_1 : i32 to vector<16x72xi32>
    %10 = arith.cmpi ne, %8, %9 : vector<16x72xi32>
    %c0_i32_2 = arith.constant 0 : i32
    %11 = vector.broadcast %c0_i32_2 : i32 to vector<16x72xi32>
    %12 = arith.cmpi slt, %8, %11 : vector<16x72xi32>
    %c0_i32_3 = arith.constant 0 : i32
    %13 = arith.cmpi slt, %6, %c0_i32_3 : i32
    %14 = vector.broadcast %13 : i1 to vector<16x72xi1>
    %15 = vector.broadcast %14 : vector<16x72xi1> to vector<16x72xi1>
    %16 = arith.xori %12, %15 : vector<16x72xi1>
    %17 = arith.andi %16, %10 : vector<16x72xi1>
    %18 = vector.broadcast %6 : i32 to vector<16x72xi32>
    %19 = arith.addi %8, %18 : vector<16x72xi32>
    %20 = arith.select %17, %19, %8 : vector<16x72xi1>, vector<16x72xi32>
    %c64_i32 = arith.constant 64 : i32
    %21 = vector.broadcast %c64_i32 : i32 to vector<16x72xi32>
    %22 = arith.addi %21, %20 : vector<16x72xi32>
    %23 = arith.cmpi eq, %1, %22 : vector<16x72xi32>
    %24 = arith.ori %4, %23 : vector<16x72xi1>
    %c0_4 = arith.constant 0 : index
    %c0_5 = arith.constant 0 : index
    %25 = vector.load %arg1[%c0_4, %c0_5] : memref<212x32xf32, #tpu.memory_space<vmem>>, vector<72x32xf32>
    %26 = arith.truncf %25 : vector<72x32xf32> to vector<72x32xbf16>
    %27 = arith.extui %24 : vector<16x72xi1> to vector<16x72xi32>
    %28 = arith.sitofp %27 : vector<16x72xi32> to vector<16x72xf32>
    %29 = arith.truncf %28 : vector<16x72xf32> to vector<16x72xbf16>
    %cst = arith.constant dense<0.000000e+00> : vector<16x32xf32>
    %30 = tpu.matmul %29, %26, %cst {dimension_numbers = #tpu.dot_dimension_numbers<[1], [0], [0], [1], [0, 0, 1, 1], [], []>} : vector<16x72xbf16>, vector<72x32xbf16>, vector<16x32xf32> -> vector<16x32xf32>
    %c136 = arith.constant 136 : index
    %c0_6 = arith.constant 0 : index
    %31 = vector.load %arg1[%c136, %c0_6] : memref<212x32xf32, #tpu.memory_space<vmem>>, vector<64x32xf32>
    %c0_7 = arith.constant 0 : index
    %c0_8 = arith.constant 0 : index
    %32 = vector.load %arg3[%c0_7, %c0_8] : memref<64x16xf32, #tpu.memory_space<vmem>>, vector<64x16xf32>
    %c200 = arith.constant 200 : index
    %c0_9 = arith.constant 0 : index
    %33 = vector.load %arg1[%c200, %c0_9] : memref<212x32xf32, #tpu.memory_space<vmem>>, vector<12x32xf32>
    %c0_10 = arith.constant 0 : index
    %c0_11 = arith.constant 0 : index
    %34 = vector.load %arg2[%c0_10, %c0_11] : memref<96x128xbf16, #tpu.memory_space<vmem>>, vector<32x128xbf16>
    %c72 = arith.constant 72 : index
    %c0_12 = arith.constant 0 : index
    %35 = vector.load %arg1[%c72, %c0_12] : memref<212x32xf32, #tpu.memory_space<vmem>>, vector<32x32xf32>
    %36 = arith.truncf %35 : vector<32x32xf32> to vector<32x32xbf16>
    %37 = vector.extract_strided_slice %33 {offsets = [6, 0], sizes = [1, 32], strides = [1, 1]} : vector<12x32xf32> to vector<1x32xf32>
    %38 = vector.extract_strided_slice %33 {offsets = [2, 0], sizes = [1, 32], strides = [1, 1]} : vector<12x32xf32> to vector<1x32xf32>
    %39 = vector.extract_strided_slice %33 {offsets = [3, 0], sizes = [1, 32], strides = [1, 1]} : vector<12x32xf32> to vector<1x32xf32>
    %cst_13 = arith.constant dense<0.000000e+00> : vector<16xf32>
    %40 = vector.multi_reduction <add>, %30, %cst_13 [1] : vector<16x32xf32> to vector<16xf32>
    %41 = vector.shape_cast %40 : vector<16xf32> to vector<16x1xf32>
    %cst_14 = arith.constant 3.200000e+01 : f32
    %42 = vector.broadcast %cst_14 : f32 to vector<16x1xf32>
    %43 = arith.divf %41, %42 : vector<16x1xf32>
    %44 = vector.broadcast %43 : vector<16x1xf32> to vector<16x32xf32>
    %45 = arith.subf %30, %44 : vector<16x32xf32>
    %46 = arith.mulf %45, %45 : vector<16x32xf32>
    %cst_15 = arith.constant dense<0.000000e+00> : vector<16xf32>
    %47 = vector.multi_reduction <add>, %46, %cst_15 [1] : vector<16x32xf32> to vector<16xf32>
    %48 = vector.shape_cast %47 : vector<16xf32> to vector<16x1xf32>
    %cst_16 = arith.constant 3.200000e+01 : f32
    %49 = vector.broadcast %cst_16 : f32 to vector<16x1xf32>
    %50 = arith.divf %48, %49 : vector<16x1xf32>
    %51 = vector.broadcast %43 : vector<16x1xf32> to vector<16x32xf32>
    %52 = arith.subf %30, %51 : vector<16x32xf32>
    %cst_17 = arith.constant 9.99999974E-6 : f32
    %53 = vector.broadcast %cst_17 : f32 to vector<16x1xf32>
    %54 = arith.addf %50, %53 : vector<16x1xf32>
    %55 = math.rsqrt %54 : vector<16x1xf32>
    %56 = vector.broadcast %55 : vector<16x1xf32> to vector<16x32xf32>
    %57 = arith.mulf %52, %56 : vector<16x32xf32>
    %58 = vector.broadcast %38 : vector<1x32xf32> to vector<16x32xf32>
    %59 = arith.mulf %58, %57 : vector<16x32xf32>
    %60 = vector.broadcast %39 : vector<1x32xf32> to vector<16x32xf32>
    %61 = arith.addf %59, %60 : vector<16x32xf32>
    %62 = arith.truncf %61 : vector<16x32xf32> to vector<16x32xbf16>
    %cst_18 = arith.constant dense<0.000000e+00> : vector<16x128xf32>
    %63 = tpu.matmul %62, %34, %cst_18 {dimension_numbers = #tpu.dot_dimension_numbers<[1], [0], [0], [1], [0, 0, 1, 1], [], []>} : vector<16x32xbf16>, vector<32x128xbf16>, vector<16x128xf32> -> vector<16x128xf32>
    %64 = vector.extract_strided_slice %63 {offsets = [0, 0], sizes = [16, 32], strides = [1, 1]} : vector<16x128xf32> to vector<16x32xf32>
    %65 = vector.extract_strided_slice %63 {offsets = [0, 32], sizes = [16, 32], strides = [1, 1]} : vector<16x128xf32> to vector<16x32xf32>
    %66 = vector.extract_strided_slice %63 {offsets = [0, 64], sizes = [16, 32], strides = [1, 1]} : vector<16x128xf32> to vector<16x32xf32>
    %67 = tpu.concatenate %64, %64, %64, %64 in 0 : vector<16x32xf32>, vector<16x32xf32>, vector<16x32xf32>, vector<16x32xf32> -> vector<64x32xf32>
    %68 = arith.mulf %67, %31 : vector<64x32xf32>
    %69 = arith.truncf %68 : vector<64x32xf32> to vector<64x32xbf16>
    %70 = arith.truncf %65 : vector<16x32xf32> to vector<16x32xbf16>
    %cst_19 = arith.constant dense<0.000000e+00> : vector<64x16xf32>
    %71 = tpu.matmul %69, %70, %cst_19 {dimension_numbers = #tpu.dot_dimension_numbers<[1], [1], [0], [0], [0, 0, 1, 0], [], []>} : vector<64x32xbf16>, vector<16x32xbf16>, vector<64x16xf32> -> vector<64x16xf32>
    %72 = arith.addf %71, %32 : vector<64x16xf32>
    %cst_20 = arith.constant dense<0xFF800000> : vector<64xf32>
    %73 = vector.multi_reduction <maximumf>, %72, %cst_20 [1] : vector<64x16xf32> to vector<64xf32>
    %74 = vector.shape_cast %73 : vector<64xf32> to vector<64x1xf32>
    %75 = vector.broadcast %74 : vector<64x1xf32> to vector<64x16xf32>
    %76 = arith.subf %72, %75 : vector<64x16xf32>
    %77 = math.exp %76 : vector<64x16xf32>
    %cst_21 = arith.constant dense<0.000000e+00> : vector<64xf32>
    %78 = vector.multi_reduction <add>, %77, %cst_21 [1] : vector<64x16xf32> to vector<64xf32>
    %79 = vector.shape_cast %78 : vector<64xf32> to vector<64x1xf32>
    %80 = tpu.reciprocal %79 {approx = true} : vector<64x1xf32> -> vector<64x1xf32>
    %81 = vector.broadcast %80 : vector<64x1xf32> to vector<64x16xf32>
    %82 = arith.mulf %77, %81 : vector<64x16xf32>
    %83 = arith.truncf %82 : vector<64x16xf32> to vector<64x16xbf16>
    %84 = arith.truncf %66 : vector<16x32xf32> to vector<16x32xbf16>
    %cst_22 = arith.constant dense<0.000000e+00> : vector<64x32xf32>
    %85 = tpu.matmul %83, %84, %cst_22 {dimension_numbers = #tpu.dot_dimension_numbers<[1], [0], [0], [1], [0, 0, 1, 1], [], []>} : vector<64x16xbf16>, vector<16x32xbf16>, vector<64x32xf32> -> vector<64x32xf32>
    %86 = arith.mulf %85, %31 : vector<64x32xf32>
    %87 = vector.extract_strided_slice %86 {offsets = [0, 0], sizes = [16, 32], strides = [1, 1]} : vector<64x32xf32> to vector<16x32xf32>
    %88 = vector.extract_strided_slice %86 {offsets = [16, 0], sizes = [16, 32], strides = [1, 1]} : vector<64x32xf32> to vector<16x32xf32>
    %89 = arith.addf %87, %88 : vector<16x32xf32>
    %90 = vector.extract_strided_slice %86 {offsets = [32, 0], sizes = [16, 32], strides = [1, 1]} : vector<64x32xf32> to vector<16x32xf32>
    %91 = arith.addf %89, %90 : vector<16x32xf32>
    %92 = vector.extract_strided_slice %86 {offsets = [48, 0], sizes = [16, 32], strides = [1, 1]} : vector<64x32xf32> to vector<16x32xf32>
    %93 = arith.addf %91, %92 : vector<16x32xf32>
    %94 = arith.truncf %93 : vector<16x32xf32> to vector<16x32xbf16>
    %cst_23 = arith.constant dense<0.000000e+00> : vector<16x32xf32>
    %95 = tpu.matmul %94, %36, %cst_23 {dimension_numbers = #tpu.dot_dimension_numbers<[1], [0], [0], [1], [0, 0, 1, 1], [], []>} : vector<16x32xbf16>, vector<32x32xbf16>, vector<16x32xf32> -> vector<16x32xf32>
    %96 = vector.broadcast %37 : vector<1x32xf32> to vector<16x32xf32>
    %97 = arith.addf %95, %96 : vector<16x32xf32>
    %98 = arith.addf %30, %97 : vector<16x32xf32>
    %99 = vector.extract_strided_slice %33 {offsets = [4, 0], sizes = [1, 32], strides = [1, 1]} : vector<12x32xf32> to vector<1x32xf32>
    %100 = vector.extract_strided_slice %33 {offsets = [5, 0], sizes = [1, 32], strides = [1, 1]} : vector<12x32xf32> to vector<1x32xf32>
    %cst_24 = arith.constant dense<0.000000e+00> : vector<16xf32>
    %101 = vector.multi_reduction <add>, %98, %cst_24 [1] : vector<16x32xf32> to vector<16xf32>
    %102 = vector.shape_cast %101 : vector<16xf32> to vector<16x1xf32>
    %cst_25 = arith.constant 3.200000e+01 : f32
    %103 = vector.broadcast %cst_25 : f32 to vector<16x1xf32>
    %104 = arith.divf %102, %103 : vector<16x1xf32>
    %105 = vector.broadcast %104 : vector<16x1xf32> to vector<16x32xf32>
    %106 = arith.subf %98, %105 : vector<16x32xf32>
    %107 = arith.mulf %106, %106 : vector<16x32xf32>
    %cst_26 = arith.constant dense<0.000000e+00> : vector<16xf32>
    %108 = vector.multi_reduction <add>, %107, %cst_26 [1] : vector<16x32xf32> to vector<16xf32>
    %109 = vector.shape_cast %108 : vector<16xf32> to vector<16x1xf32>
    %cst_27 = arith.constant 3.200000e+01 : f32
    %110 = vector.broadcast %cst_27 : f32 to vector<16x1xf32>
    %111 = arith.divf %109, %110 : vector<16x1xf32>
    %112 = vector.broadcast %104 : vector<16x1xf32> to vector<16x32xf32>
    %113 = arith.subf %98, %112 : vector<16x32xf32>
    %cst_28 = arith.constant 9.99999974E-6 : f32
    %114 = vector.broadcast %cst_28 : f32 to vector<16x1xf32>
    %115 = arith.addf %111, %114 : vector<16x1xf32>
    %116 = math.rsqrt %115 : vector<16x1xf32>
    %117 = vector.broadcast %116 : vector<16x1xf32> to vector<16x32xf32>
    %118 = arith.mulf %113, %117 : vector<16x32xf32>
    %119 = vector.broadcast %99 : vector<1x32xf32> to vector<16x32xf32>
    %120 = arith.mulf %119, %118 : vector<16x32xf32>
    %121 = vector.broadcast %100 : vector<1x32xf32> to vector<16x32xf32>
    %122 = arith.addf %120, %121 : vector<16x32xf32>
    %123 = arith.truncf %122 : vector<16x32xf32> to vector<16x32xbf16>
    %cst_29 = arith.constant dense<0.000000e+00> : vector<16x128xf32>
    %124 = tpu.matmul %123, %34, %cst_29 {dimension_numbers = #tpu.dot_dimension_numbers<[1], [0], [0], [1], [0, 0, 1, 1], [], []>} : vector<16x32xbf16>, vector<32x128xbf16>, vector<16x128xf32> -> vector<16x128xf32>
    %125 = vector.extract_strided_slice %124 {offsets = [0, 0], sizes = [16, 32], strides = [1, 1]} : vector<16x128xf32> to vector<16x32xf32>
    %126 = vector.extract_strided_slice %124 {offsets = [0, 32], sizes = [16, 32], strides = [1, 1]} : vector<16x128xf32> to vector<16x32xf32>
    %127 = vector.extract_strided_slice %124 {offsets = [0, 64], sizes = [16, 32], strides = [1, 1]} : vector<16x128xf32> to vector<16x32xf32>
    %128 = tpu.concatenate %125, %125, %125, %125 in 0 : vector<16x32xf32>, vector<16x32xf32>, vector<16x32xf32>, vector<16x32xf32> -> vector<64x32xf32>
    %129 = arith.mulf %128, %31 : vector<64x32xf32>
    %130 = arith.truncf %129 : vector<64x32xf32> to vector<64x32xbf16>
    %131 = arith.truncf %126 : vector<16x32xf32> to vector<16x32xbf16>
    %cst_30 = arith.constant dense<0.000000e+00> : vector<64x16xf32>
    %132 = tpu.matmul %130, %131, %cst_30 {dimension_numbers = #tpu.dot_dimension_numbers<[1], [1], [0], [0], [0, 0, 1, 0], [], []>} : vector<64x32xbf16>, vector<16x32xbf16>, vector<64x16xf32> -> vector<64x16xf32>
    %133 = arith.addf %132, %32 : vector<64x16xf32>
    %cst_31 = arith.constant dense<0xFF800000> : vector<64xf32>
    %134 = vector.multi_reduction <maximumf>, %133, %cst_31 [1] : vector<64x16xf32> to vector<64xf32>
    %135 = vector.shape_cast %134 : vector<64xf32> to vector<64x1xf32>
    %136 = vector.broadcast %135 : vector<64x1xf32> to vector<64x16xf32>
    %137 = arith.subf %133, %136 : vector<64x16xf32>
    %138 = math.exp %137 : vector<64x16xf32>
    %cst_32 = arith.constant dense<0.000000e+00> : vector<64xf32>
    %139 = vector.multi_reduction <add>, %138, %cst_32 [1] : vector<64x16xf32> to vector<64xf32>
    %140 = vector.shape_cast %139 : vector<64xf32> to vector<64x1xf32>
    %141 = tpu.reciprocal %140 {approx = true} : vector<64x1xf32> -> vector<64x1xf32>
    %142 = vector.broadcast %141 : vector<64x1xf32> to vector<64x16xf32>
    %143 = arith.mulf %138, %142 : vector<64x16xf32>
    %144 = arith.truncf %143 : vector<64x16xf32> to vector<64x16xbf16>
    %145 = arith.truncf %127 : vector<16x32xf32> to vector<16x32xbf16>
    %cst_33 = arith.constant dense<0.000000e+00> : vector<64x32xf32>
    %146 = tpu.matmul %144, %145, %cst_33 {dimension_numbers = #tpu.dot_dimension_numbers<[1], [0], [0], [1], [0, 0, 1, 1], [], []>} : vector<64x16xbf16>, vector<16x32xbf16>, vector<64x32xf32> -> vector<64x32xf32>
    %147 = arith.mulf %146, %31 : vector<64x32xf32>
    %148 = vector.extract_strided_slice %147 {offsets = [0, 0], sizes = [16, 32], strides = [1, 1]} : vector<64x32xf32> to vector<16x32xf32>
    %149 = vector.extract_strided_slice %147 {offsets = [16, 0], sizes = [16, 32], strides = [1, 1]} : vector<64x32xf32> to vector<16x32xf32>
    %150 = arith.addf %148, %149 : vector<16x32xf32>
    %151 = vector.extract_strided_slice %147 {offsets = [32, 0], sizes = [16, 32], strides = [1, 1]} : vector<64x32xf32> to vector<16x32xf32>
    %152 = arith.addf %150, %151 : vector<16x32xf32>
    %153 = vector.extract_strided_slice %147 {offsets = [48, 0], sizes = [16, 32], strides = [1, 1]} : vector<64x32xf32> to vector<16x32xf32>
    %154 = arith.addf %152, %153 : vector<16x32xf32>
    %155 = arith.truncf %154 : vector<16x32xf32> to vector<16x32xbf16>
    %cst_34 = arith.constant dense<0.000000e+00> : vector<16x32xf32>
    %156 = tpu.matmul %155, %36, %cst_34 {dimension_numbers = #tpu.dot_dimension_numbers<[1], [0], [0], [1], [0, 0, 1, 1], [], []>} : vector<16x32xbf16>, vector<32x32xbf16>, vector<16x32xf32> -> vector<16x32xf32>
    %157 = vector.broadcast %37 : vector<1x32xf32> to vector<16x32xf32>
    %158 = arith.addf %156, %157 : vector<16x32xf32>
    %159 = arith.addf %98, %158 : vector<16x32xf32>
    %c32 = arith.constant 32 : index
    %c0_35 = arith.constant 0 : index
    %160 = vector.load %arg2[%c32, %c0_35] : memref<96x128xbf16, #tpu.memory_space<vmem>>, vector<32x128xbf16>
    %c104 = arith.constant 104 : index
    %c0_36 = arith.constant 0 : index
    %161 = vector.load %arg1[%c104, %c0_36] : memref<212x32xf32, #tpu.memory_space<vmem>>, vector<32x32xf32>
    %162 = arith.truncf %161 : vector<32x32xf32> to vector<32x32xbf16>
    %163 = vector.extract_strided_slice %33 {offsets = [11, 0], sizes = [1, 32], strides = [1, 1]} : vector<12x32xf32> to vector<1x32xf32>
    %164 = vector.extract_strided_slice %33 {offsets = [7, 0], sizes = [1, 32], strides = [1, 1]} : vector<12x32xf32> to vector<1x32xf32>
    %165 = vector.extract_strided_slice %33 {offsets = [8, 0], sizes = [1, 32], strides = [1, 1]} : vector<12x32xf32> to vector<1x32xf32>
    %cst_37 = arith.constant dense<0.000000e+00> : vector<16xf32>
    %166 = vector.multi_reduction <add>, %159, %cst_37 [1] : vector<16x32xf32> to vector<16xf32>
    %167 = vector.shape_cast %166 : vector<16xf32> to vector<16x1xf32>
    %cst_38 = arith.constant 3.200000e+01 : f32
    %168 = vector.broadcast %cst_38 : f32 to vector<16x1xf32>
    %169 = arith.divf %167, %168 : vector<16x1xf32>
    %170 = vector.broadcast %169 : vector<16x1xf32> to vector<16x32xf32>
    %171 = arith.subf %159, %170 : vector<16x32xf32>
    %172 = arith.mulf %171, %171 : vector<16x32xf32>
    %cst_39 = arith.constant dense<0.000000e+00> : vector<16xf32>
    %173 = vector.multi_reduction <add>, %172, %cst_39 [1] : vector<16x32xf32> to vector<16xf32>
    %174 = vector.shape_cast %173 : vector<16xf32> to vector<16x1xf32>
    %cst_40 = arith.constant 3.200000e+01 : f32
    %175 = vector.broadcast %cst_40 : f32 to vector<16x1xf32>
    %176 = arith.divf %174, %175 : vector<16x1xf32>
    %177 = vector.broadcast %169 : vector<16x1xf32> to vector<16x32xf32>
    %178 = arith.subf %159, %177 : vector<16x32xf32>
    %cst_41 = arith.constant 9.99999974E-6 : f32
    %179 = vector.broadcast %cst_41 : f32 to vector<16x1xf32>
    %180 = arith.addf %176, %179 : vector<16x1xf32>
    %181 = math.rsqrt %180 : vector<16x1xf32>
    %182 = vector.broadcast %181 : vector<16x1xf32> to vector<16x32xf32>
    %183 = arith.mulf %178, %182 : vector<16x32xf32>
    %184 = vector.broadcast %164 : vector<1x32xf32> to vector<16x32xf32>
    %185 = arith.mulf %184, %183 : vector<16x32xf32>
    %186 = vector.broadcast %165 : vector<1x32xf32> to vector<16x32xf32>
    %187 = arith.addf %185, %186 : vector<16x32xf32>
    %188 = arith.truncf %187 : vector<16x32xf32> to vector<16x32xbf16>
    %cst_42 = arith.constant dense<0.000000e+00> : vector<16x128xf32>
    %189 = tpu.matmul %188, %160, %cst_42 {dimension_numbers = #tpu.dot_dimension_numbers<[1], [0], [0], [1], [0, 0, 1, 1], [], []>} : vector<16x32xbf16>, vector<32x128xbf16>, vector<16x128xf32> -> vector<16x128xf32>
    %190 = vector.extract_strided_slice %189 {offsets = [0, 0], sizes = [16, 32], strides = [1, 1]} : vector<16x128xf32> to vector<16x32xf32>
    %191 = vector.extract_strided_slice %189 {offsets = [0, 32], sizes = [16, 32], strides = [1, 1]} : vector<16x128xf32> to vector<16x32xf32>
    %192 = vector.extract_strided_slice %189 {offsets = [0, 64], sizes = [16, 32], strides = [1, 1]} : vector<16x128xf32> to vector<16x32xf32>
    %193 = tpu.concatenate %190, %190, %190, %190 in 0 : vector<16x32xf32>, vector<16x32xf32>, vector<16x32xf32>, vector<16x32xf32> -> vector<64x32xf32>
    %194 = arith.mulf %193, %31 : vector<64x32xf32>
    %195 = arith.truncf %194 : vector<64x32xf32> to vector<64x32xbf16>
    %196 = arith.truncf %191 : vector<16x32xf32> to vector<16x32xbf16>
    %cst_43 = arith.constant dense<0.000000e+00> : vector<64x16xf32>
    %197 = tpu.matmul %195, %196, %cst_43 {dimension_numbers = #tpu.dot_dimension_numbers<[1], [1], [0], [0], [0, 0, 1, 0], [], []>} : vector<64x32xbf16>, vector<16x32xbf16>, vector<64x16xf32> -> vector<64x16xf32>
    %198 = arith.addf %197, %32 : vector<64x16xf32>
    %cst_44 = arith.constant dense<0xFF800000> : vector<64xf32>
    %199 = vector.multi_reduction <maximumf>, %198, %cst_44 [1] : vector<64x16xf32> to vector<64xf32>
    %200 = vector.shape_cast %199 : vector<64xf32> to vector<64x1xf32>
    %201 = vector.broadcast %200 : vector<64x1xf32> to vector<64x16xf32>
    %202 = arith.subf %198, %201 : vector<64x16xf32>
    %203 = math.exp %202 : vector<64x16xf32>
    %cst_45 = arith.constant dense<0.000000e+00> : vector<64xf32>
    %204 = vector.multi_reduction <add>, %203, %cst_45 [1] : vector<64x16xf32> to vector<64xf32>
    %205 = vector.shape_cast %204 : vector<64xf32> to vector<64x1xf32>
    %206 = tpu.reciprocal %205 {approx = true} : vector<64x1xf32> -> vector<64x1xf32>
    %207 = vector.broadcast %206 : vector<64x1xf32> to vector<64x16xf32>
    %208 = arith.mulf %203, %207 : vector<64x16xf32>
    %209 = arith.truncf %208 : vector<64x16xf32> to vector<64x16xbf16>
    %210 = arith.truncf %192 : vector<16x32xf32> to vector<16x32xbf16>
    %cst_46 = arith.constant dense<0.000000e+00> : vector<64x32xf32>
    %211 = tpu.matmul %209, %210, %cst_46 {dimension_numbers = #tpu.dot_dimension_numbers<[1], [0], [0], [1], [0, 0, 1, 1], [], []>} : vector<64x16xbf16>, vector<16x32xbf16>, vector<64x32xf32> -> vector<64x32xf32>
    %212 = arith.mulf %211, %31 : vector<64x32xf32>
    %213 = vector.extract_strided_slice %212 {offsets = [0, 0], sizes = [16, 32], strides = [1, 1]} : vector<64x32xf32> to vector<16x32xf32>
    %214 = vector.extract_strided_slice %212 {offsets = [16, 0], sizes = [16, 32], strides = [1, 1]} : vector<64x32xf32> to vector<16x32xf32>
    %215 = arith.addf %213, %214 : vector<16x32xf32>
    %216 = vector.extract_strided_slice %212 {offsets = [32, 0], sizes = [16, 32], strides = [1, 1]} : vector<64x32xf32> to vector<16x32xf32>
    %217 = arith.addf %215, %216 : vector<16x32xf32>
    %218 = vector.extract_strided_slice %212 {offsets = [48, 0], sizes = [16, 32], strides = [1, 1]} : vector<64x32xf32> to vector<16x32xf32>
    %219 = arith.addf %217, %218 : vector<16x32xf32>
    %220 = arith.truncf %219 : vector<16x32xf32> to vector<16x32xbf16>
    %cst_47 = arith.constant dense<0.000000e+00> : vector<16x32xf32>
    %221 = tpu.matmul %220, %162, %cst_47 {dimension_numbers = #tpu.dot_dimension_numbers<[1], [0], [0], [1], [0, 0, 1, 1], [], []>} : vector<16x32xbf16>, vector<32x32xbf16>, vector<16x32xf32> -> vector<16x32xf32>
    %222 = vector.broadcast %163 : vector<1x32xf32> to vector<16x32xf32>
    %223 = arith.addf %221, %222 : vector<16x32xf32>
    %224 = arith.addf %159, %223 : vector<16x32xf32>
    %225 = vector.extract_strided_slice %33 {offsets = [9, 0], sizes = [1, 32], strides = [1, 1]} : vector<12x32xf32> to vector<1x32xf32>
    %226 = vector.extract_strided_slice %33 {offsets = [10, 0], sizes = [1, 32], strides = [1, 1]} : vector<12x32xf32> to vector<1x32xf32>
    %cst_48 = arith.constant dense<0.000000e+00> : vector<16xf32>
    %227 = vector.multi_reduction <add>, %224, %cst_48 [1] : vector<16x32xf32> to vector<16xf32>
    %228 = vector.shape_cast %227 : vector<16xf32> to vector<16x1xf32>
    %cst_49 = arith.constant 3.200000e+01 : f32
    %229 = vector.broadcast %cst_49 : f32 to vector<16x1xf32>
    %230 = arith.divf %228, %229 : vector<16x1xf32>
    %231 = vector.broadcast %230 : vector<16x1xf32> to vector<16x32xf32>
    %232 = arith.subf %224, %231 : vector<16x32xf32>
    %233 = arith.mulf %232, %232 : vector<16x32xf32>
    %cst_50 = arith.constant dense<0.000000e+00> : vector<16xf32>
    %234 = vector.multi_reduction <add>, %233, %cst_50 [1] : vector<16x32xf32> to vector<16xf32>
    %235 = vector.shape_cast %234 : vector<16xf32> to vector<16x1xf32>
    %cst_51 = arith.constant 3.200000e+01 : f32
    %236 = vector.broadcast %cst_51 : f32 to vector<16x1xf32>
    %237 = arith.divf %235, %236 : vector<16x1xf32>
    %238 = vector.broadcast %230 : vector<16x1xf32> to vector<16x32xf32>
    %239 = arith.subf %224, %238 : vector<16x32xf32>
    %cst_52 = arith.constant 9.99999974E-6 : f32
    %240 = vector.broadcast %cst_52 : f32 to vector<16x1xf32>
    %241 = arith.addf %237, %240 : vector<16x1xf32>
    %242 = math.rsqrt %241 : vector<16x1xf32>
    %243 = vector.broadcast %242 : vector<16x1xf32> to vector<16x32xf32>
    %244 = arith.mulf %239, %243 : vector<16x32xf32>
    %245 = vector.broadcast %225 : vector<1x32xf32> to vector<16x32xf32>
    %246 = arith.mulf %245, %244 : vector<16x32xf32>
    %247 = vector.broadcast %226 : vector<1x32xf32> to vector<16x32xf32>
    %248 = arith.addf %246, %247 : vector<16x32xf32>
    %249 = arith.truncf %248 : vector<16x32xf32> to vector<16x32xbf16>
    %cst_53 = arith.constant dense<0.000000e+00> : vector<16x128xf32>
    %250 = tpu.matmul %249, %160, %cst_53 {dimension_numbers = #tpu.dot_dimension_numbers<[1], [0], [0], [1], [0, 0, 1, 1], [], []>} : vector<16x32xbf16>, vector<32x128xbf16>, vector<16x128xf32> -> vector<16x128xf32>
    %251 = vector.extract_strided_slice %250 {offsets = [0, 0], sizes = [16, 32], strides = [1, 1]} : vector<16x128xf32> to vector<16x32xf32>
    %252 = vector.extract_strided_slice %250 {offsets = [0, 32], sizes = [16, 32], strides = [1, 1]} : vector<16x128xf32> to vector<16x32xf32>
    %253 = vector.extract_strided_slice %250 {offsets = [0, 64], sizes = [16, 32], strides = [1, 1]} : vector<16x128xf32> to vector<16x32xf32>
    %254 = tpu.concatenate %251, %251, %251, %251 in 0 : vector<16x32xf32>, vector<16x32xf32>, vector<16x32xf32>, vector<16x32xf32> -> vector<64x32xf32>
    %255 = arith.mulf %254, %31 : vector<64x32xf32>
    %256 = arith.truncf %255 : vector<64x32xf32> to vector<64x32xbf16>
    %257 = arith.truncf %252 : vector<16x32xf32> to vector<16x32xbf16>
    %cst_54 = arith.constant dense<0.000000e+00> : vector<64x16xf32>
    %258 = tpu.matmul %256, %257, %cst_54 {dimension_numbers = #tpu.dot_dimension_numbers<[1], [1], [0], [0], [0, 0, 1, 0], [], []>} : vector<64x32xbf16>, vector<16x32xbf16>, vector<64x16xf32> -> vector<64x16xf32>
    %259 = arith.addf %258, %32 : vector<64x16xf32>
    %cst_55 = arith.constant dense<0xFF800000> : vector<64xf32>
    %260 = vector.multi_reduction <maximumf>, %259, %cst_55 [1] : vector<64x16xf32> to vector<64xf32>
    %261 = vector.shape_cast %260 : vector<64xf32> to vector<64x1xf32>
    %262 = vector.broadcast %261 : vector<64x1xf32> to vector<64x16xf32>
    %263 = arith.subf %259, %262 : vector<64x16xf32>
    %264 = math.exp %263 : vector<64x16xf32>
    %cst_56 = arith.constant dense<0.000000e+00> : vector<64xf32>
    %265 = vector.multi_reduction <add>, %264, %cst_56 [1] : vector<64x16xf32> to vector<64xf32>
    %266 = vector.shape_cast %265 : vector<64xf32> to vector<64x1xf32>
    %267 = tpu.reciprocal %266 {approx = true} : vector<64x1xf32> -> vector<64x1xf32>
    %268 = vector.broadcast %267 : vector<64x1xf32> to vector<64x16xf32>
    %269 = arith.mulf %264, %268 : vector<64x16xf32>
    %270 = arith.truncf %269 : vector<64x16xf32> to vector<64x16xbf16>
    %271 = arith.truncf %253 : vector<16x32xf32> to vector<16x32xbf16>
    %cst_57 = arith.constant dense<0.000000e+00> : vector<64x32xf32>
    %272 = tpu.matmul %270, %271, %cst_57 {dimension_numbers = #tpu.dot_dimension_numbers<[1], [0], [0], [1], [0, 0, 1, 1], [], []>} : vector<64x16xbf16>, vector<16x32xbf16>, vector<64x32xf32> -> vector<64x32xf32>
    %273 = arith.mulf %272, %31 : vector<64x32xf32>
    %274 = vector.extract_strided_slice %273 {offsets = [0, 0], sizes = [16, 32], strides = [1, 1]} : vector<64x32xf32> to vector<16x32xf32>
    %275 = vector.extract_strided_slice %273 {offsets = [16, 0], sizes = [16, 32], strides = [1, 1]} : vector<64x32xf32> to vector<16x32xf32>
    %276 = arith.addf %274, %275 : vector<16x32xf32>
    %277 = vector.extract_strided_slice %273 {offsets = [32, 0], sizes = [16, 32], strides = [1, 1]} : vector<64x32xf32> to vector<16x32xf32>
    %278 = arith.addf %276, %277 : vector<16x32xf32>
    %279 = vector.extract_strided_slice %273 {offsets = [48, 0], sizes = [16, 32], strides = [1, 1]} : vector<64x32xf32> to vector<16x32xf32>
    %280 = arith.addf %278, %279 : vector<16x32xf32>
    %281 = arith.truncf %280 : vector<16x32xf32> to vector<16x32xbf16>
    %cst_58 = arith.constant dense<0.000000e+00> : vector<16x32xf32>
    %282 = tpu.matmul %281, %162, %cst_58 {dimension_numbers = #tpu.dot_dimension_numbers<[1], [0], [0], [1], [0, 0, 1, 1], [], []>} : vector<16x32xbf16>, vector<32x32xbf16>, vector<16x32xf32> -> vector<16x32xf32>
    %283 = vector.broadcast %163 : vector<1x32xf32> to vector<16x32xf32>
    %284 = arith.addf %282, %283 : vector<16x32xf32>
    %285 = arith.addf %224, %284 : vector<16x32xf32>
    %286 = vector.extract_strided_slice %33 {offsets = [0, 0], sizes = [1, 32], strides = [1, 1]} : vector<12x32xf32> to vector<1x32xf32>
    %287 = vector.extract_strided_slice %33 {offsets = [1, 0], sizes = [1, 32], strides = [1, 1]} : vector<12x32xf32> to vector<1x32xf32>
    %cst_59 = arith.constant dense<0.000000e+00> : vector<16xf32>
    %288 = vector.multi_reduction <add>, %285, %cst_59 [1] : vector<16x32xf32> to vector<16xf32>
    %289 = vector.shape_cast %288 : vector<16xf32> to vector<16x1xf32>
    %cst_60 = arith.constant 3.200000e+01 : f32
    %290 = vector.broadcast %cst_60 : f32 to vector<16x1xf32>
    %291 = arith.divf %289, %290 : vector<16x1xf32>
    %292 = vector.broadcast %291 : vector<16x1xf32> to vector<16x32xf32>
    %293 = arith.subf %285, %292 : vector<16x32xf32>
    %294 = arith.mulf %293, %293 : vector<16x32xf32>
    %cst_61 = arith.constant dense<0.000000e+00> : vector<16xf32>
    %295 = vector.multi_reduction <add>, %294, %cst_61 [1] : vector<16x32xf32> to vector<16xf32>
    %296 = vector.shape_cast %295 : vector<16xf32> to vector<16x1xf32>
    %cst_62 = arith.constant 3.200000e+01 : f32
    %297 = vector.broadcast %cst_62 : f32 to vector<16x1xf32>
    %298 = arith.divf %296, %297 : vector<16x1xf32>
    %299 = vector.broadcast %291 : vector<16x1xf32> to vector<16x32xf32>
    %300 = arith.subf %285, %299 : vector<16x32xf32>
    %cst_63 = arith.constant 9.99999974E-6 : f32
    %301 = vector.broadcast %cst_63 : f32 to vector<16x1xf32>
    %302 = arith.addf %298, %301 : vector<16x1xf32>
    %303 = math.rsqrt %302 : vector<16x1xf32>
    %304 = vector.broadcast %303 : vector<16x1xf32> to vector<16x32xf32>
    %305 = arith.mulf %300, %304 : vector<16x32xf32>
    %306 = vector.broadcast %286 : vector<1x32xf32> to vector<16x32xf32>
    %307 = arith.mulf %306, %305 : vector<16x32xf32>
    %308 = vector.broadcast %287 : vector<1x32xf32> to vector<16x32xf32>
    %309 = arith.addf %307, %308 : vector<16x32xf32>
    %c64 = arith.constant 64 : index
    %c0_64 = arith.constant 0 : index
    %310 = vector.load %arg2[%c64, %c0_64] : memref<96x128xbf16, #tpu.memory_space<vmem>>, vector<32x128xbf16>
    %311 = arith.truncf %309 : vector<16x32xf32> to vector<16x32xbf16>
    %cst_65 = arith.constant dense<0.000000e+00> : vector<16x128xf32>
    %312 = tpu.matmul %311, %310, %cst_65 {dimension_numbers = #tpu.dot_dimension_numbers<[1], [0], [0], [1], [0, 0, 1, 1], [], []>} : vector<16x32xbf16>, vector<32x128xbf16>, vector<16x128xf32> -> vector<16x128xf32>
    %c0_66 = arith.constant 0 : index
    %c0_67 = arith.constant 0 : index
    %313 = vector.load %arg4[%c0_66, %c0_67] : memref<16x128xf32, #tpu.memory_space<vmem>>, vector<16x128xf32>
    tpu.vector_store %arg4[%c0_66, %c0_67], %312 {strides = array<i32>} : memref<16x128xf32, #tpu.memory_space<vmem>>, vector<16x128xf32>,
    return
  }
}

</mosaic_0001>

<llo_original>
// kernel: _lambda_.1
$region0: #{_lambda_.1}
  #allocation0 [shape = 'u32[]', space=smem, size = 0x4, offset = 0x4, fixed_abs, tag = 'smem constant byte address 0x4 - core index']
  #allocation1 [shape = 'u32[144,128]{1,0:T(1,128)}', space=vmem, size = 0x12000, scoped, tag = 'internal scratch']
  %s0 = inlined_call_operand.vmem [shape: s32[16,1], index: 0, kind: input, shape index: {}]
  %s1 = inlined_call_operand.vmem [shape: f32[212,32], index: 1, kind: input, shape index: {}]
  %s2 = inlined_call_operand.vmem [shape: bf16[96,128], index: 2, kind: input, shape index: {}]
  %s3 = inlined_call_operand.vmem [shape: f32[64,16], index: 3, kind: input, shape index: {}]
  %s4 = inlined_call_operand.hbm [shape: f32[16,128], index: 4, kind: output, shape index: {}]
  %s5 = sld [smem:[#allocation0]]
  $region26: #{_lambda_.1} parent=0
    _
  %s7 = ssub.s32 1, %s5
  %s8 = scalar_select 0, %s7, %s5
  $region1: #{_lambda_.1} parent=0
    #allocation2 [shape = 'u8[8192]{0}', space=vmem, size = 0x2000, scoped, tag = 'output window, operand 0, single buffered']
    #allocation3 [shape = 's32[1]{0}', space=sflag, size = 0x4, scoped, tag = 'scoped memory for _lambda_.1']
    %9 = vsyncpa [#allocation3], 0
    // Predicated region
    $region2: #{_lambda_.1} parent=1 // pred_check
      _
    $region3: #{_lambda_.1} parent=1 // pred_check_branch
      %11 = sbr.rel (0) target = $region5
    $region4: #{_lambda_.1} parent=1 // pred_region
      _
    $region5: #{_lambda_.1} parent=1 // pred_fallthru
      _
    // Predicated region
    $region6: #{_lambda_.1} parent=1 // pred_check
      _
    $region7: #{_lambda_.1} parent=1 // pred_check_branch
      %13 = sbr.rel (0) target = $region9
    $region8: #{_lambda_.1} parent=1 // pred_region
      _
    $region9: #{_lambda_.1} parent=1 // pred_fallthru
      _
    // Predicated region
    $region10: #{_lambda_.1} parent=1 // pred_check
      _
    $region11: #{_lambda_.1} parent=1 // pred_check_branch
      %15 = sbr.rel (0) target = $region13
    $region12: #{_lambda_.1} parent=1 // pred_region
      _
    $region13: #{_lambda_.1} parent=1 // pred_fallthru
      _
    // Predicated region
    $region14: #{_lambda_.1} parent=1 // pred_check
      _
    $region15: #{_lambda_.1} parent=1 // pred_check_branch
      %17 = sbr.rel (0) target = $region17
    $region16: #{_lambda_.1} parent=1 // pred_region
      _
    $region17: #{_lambda_.1} parent=1 // pred_fallthru
      _
    %v19 = vld [vmem:[%s0] sm:$0xff]
    %v20 = vld [vmem:[%s0 + $0x8] sm:$0xff]
    %v21 = vlaneseq
    %v22 = vand.u32 %v21, 127
    %v23 = vlaneseq
    %v24 = vshrl.u32 %v23, 7
    %v25 = vadd.s32 %v24, 8
    %26 = vset.pattern.permute.xlu0 0
    %27 = vperm.xlu0 %26, %v19
    %v28 = vpop.permute.xlu0 %27
    %29 = vset.pattern.permute.xlu0 0
    %30 = vperm.xlu0 %29, %v20
    %v31 = vpop.permute.xlu0 %30
    %vm32 = vcmp.eq.s32.totalorder %v22, %v28
    %vm33 = vcmp.eq.s32.totalorder %v22, %v31
    %vm34 = vcmp.lt.s32.totalorder %v24, 0
    %v35 = vsub.s32 0, %v24
    %v36 = vsel %vm34, %v35, %v24
    %v37 = vshrl.u32 %v36, 3
    %v38 = vand.u32 %v36, 7
    %v39 = vsub.s32 0, %v38
    %v40 = vsel %vm34, %v39, %v38
    %vm41 = vcmp.lt.s32.totalorder %v25, 0
    %v42 = vsub.s32 0, %v25
    %v43 = vsel %vm41, %v42, %v25
    %v44 = vshrl.u32 %v43, 3
    %v45 = vand.u32 %v43, 7
    %v46 = vsub.s32 0, %v45
    %v47 = vsel %vm41, %v46, %v45
    %vm48 = vcmp.ne.s32.totalorder %v40, 0
    %vm49 = vcmp.ne.s32.totalorder %v47, 0
    %vm50 = vcmp.lt.s32.totalorder %v40, 0
    %vm51 = vcmp.lt.s32.totalorder %v47, 0
    %vm52 = vmand %vm50, %vm48
    %vm53 = vmand %vm51, %vm49
    %v54 = vadd.s32 %v40, 8
    %v55 = vadd.s32 %v47, 8
    %v56 = vsel %vm52, %v54, %v40
    %v57 = vsel %vm53, %v55, %v47
    %v58 = vadd.s32 %v56, 64
    %v59 = vadd.s32 %v57, 64
    %vm60 = vcmp.eq.s32.totalorder %v22, %v58
    %vm61 = vcmp.eq.s32.totalorder %v22, %v59
    %vm62 = vmor %vm32, %vm60
    %vm63 = vmor %vm33, %vm61
    %v64 = vld [vmem:[%s1] sm:$0xff]
    %v65 = vld [vmem:[%s1 + $0x8] sm:$0xff]
    %v66 = vld [vmem:[%s1 + $0x10] sm:$0xff]
    %v67 = vld [vmem:[%s1 + $0x18] sm:$0xff]
    %v68 = vld [vmem:[%s1 + $0x20] sm:$0xff]
    %v69 = vld [vmem:[%s1 + $0x28] sm:$0xff]
    %v70 = vld [vmem:[%s1 + $0x30] sm:$0xff]
    %v71 = vld [vmem:[%s1 + $0x38] sm:$0xff]
    %v72 = vld [vmem:[%s1 + $0x40] sm:$0xff]
    %v73 = vpack.c.bf16 %v65, %v64
    %v74 = vpack.c.bf16 %v67, %v66
    %v75 = vpack.c.bf16 %v69, %v68
    %v76 = vpack.c.bf16 %v71, %v70
    %v77 = vpack.c.bf16 %v72, %v72
    %v78 = vsel %vm62, 1, 0
    %v79 = vsel %vm63, 1, 0
    %v80 = vcvt.s32.f32 %v78
    %v81 = vcvt.s32.f32 %v79
    %v82 = vpack.c.bf16 %v81, %v80
    %vm83 = vcmask 588800
    %v85 = vsel %vm83, %v82, 0
    %vm87 = vcmask 1043456
    %v89 = vsel %vm87, %v77, 0
    %91 = vmatprep.subr.bf16.mxu0 0
    %92 = vmatpush1.bf16.msra.mxu0 0
    %93 = vmatprep.subr.bf16.mxu0 0
    %94 = vmatpush1.bf16.msra.mxu0 0
    %95 = vmatprep.subr.bf16.mxu0 0
    %96 = vmatpush1.bf16.msra.mxu0 0
    %97 = vmatprep.subr.bf16.mxu0 0
    %98 = vmatpush1.bf16.msra.mxu0 %v89
    %99 = vmatprep.subr.bf16.mxu0 0
    %100 = vmatpush1.bf16.msra.mxu0 %v76
    %101 = vmatprep.subr.bf16.mxu0 0
    %102 = vmatpush1.bf16.msra.mxu0 %v75
    %103 = vmatprep.subr.bf16.mxu0 0
    %104 = vmatpush1.bf16.msra.mxu0 %v74
    %105 = vmatprep.subr.bf16.mxu0 0
    %106 = vmatpush1.bf16.msra.mxu0 %v73
    %107 = vmatprep.subr.bf16.mxu0 0
    %108 = vmatpush2.bf16.msra.mxu0 0
    %109 = vmatprep.subr.bf16.mxu0 0
    %110 = vmatpush2.bf16.msra.mxu0 0
    %111 = vmatprep.subr.bf16.mxu0 0
    %112 = vmatpush2.bf16.msra.mxu0 0
    %113 = vmatprep.subr.bf16.mxu0 0
    %114 = vmatpush2.bf16.msra.mxu0 0
    %115 = vmatprep.subr.bf16.mxu0 0
    %116 = vmatpush2.bf16.msra.mxu0 0
    %117 = vmatprep.subr.bf16.mxu0 0
    %118 = vmatpush2.bf16.msra.mxu0 0
    %119 = vmatprep.subr.bf16.mxu0 0
    %120 = vmatpush2.bf16.msra.mxu0 0
    %121 = vmatprep.subr.bf16.mxu0 0
    %122 = vmatpush2.bf16.msra.mxu0 0
    %123 = vmatprep.mubr.bf16.mxu0 0
    %124 = vmatmul.mubr.bf16.gmra.mxu0 %v85
    %v125 = vpop.f32.mrf.mxu0
    %v126 = vadd.f32 0.0, %v125
    %v127 = vpop.f32.mrf.mxu0
    %v128 = vpop.f32.mrf.mxu0
    %v129 = vadd.f32 0.0, %v128
    %v130 = vpop.f32.mrf.mxu0
    %131 = vdwg.mxu0
    %v132 = vld [vmem:[%s1 + $0x88] sm:$0xff]
    %v133 = vld [vmem:[%s1 + $0x90] sm:$0xff]
    %v134 = vld [vmem:[%s1 + $0x98] sm:$0xff]
    %v135 = vld [vmem:[%s1 + $0xa0] sm:$0xff]
    %v136 = vld [vmem:[%s1 + $0xa8] sm:$0xff]
    %v137 = vld [vmem:[%s1 + $0xb0] sm:$0xff]
    %v138 = vld [vmem:[%s1 + $0xb8] sm:$0xff]
    %v139 = vld [vmem:[%s1 + $0xc0] sm:$0xff]
    %v140 = vld [vmem:[%s3] sm:$0xff]
    %v141 = vld [vmem:[%s3 + $0x8] sm:$0xff]
    %v142 = vld [vmem:[%s3 + $0x10] sm:$0xff]
    %v143 = vld [vmem:[%s3 + $0x18] sm:$0xff]
    %v144 = vld [vmem:[%s3 + $0x20] sm:$0xff]
    %v145 = vld [vmem:[%s3 + $0x28] sm:$0xff]
    %v146 = vld [vmem:[%s3 + $0x30] sm:$0xff]
    %v147 = vld [vmem:[%s3 + $0x38] sm:$0xff]
    %v148 = vld [vmem:[%s1 + $0xc8] sm:$0xff]
    %v149 = vld [vmem:[%s1 + $0xd0] sm:$0xf]
    %v150 = vld [vmem:[%s2] sm:$0xf]
    %v151 = vld [vmem:[%s2 + $0x4] sm:$0xf]
    %v152 = vld [vmem:[%s2 + $0x8] sm:$0xf]
    %v153 = vld [vmem:[%s2 + $0xc] sm:$0xf]
    %v154 = vld [vmem:[%s1 + $0x48] sm:$0xff]
    %v155 = vld [vmem:[%s1 + $0x50] sm:$0xff]
    %v156 = vld [vmem:[%s1 + $0x58] sm:$0xff]
    %v157 = vld [vmem:[%s1 + $0x60] sm:$0xff]
    %v158 = vpack.c.bf16 %v155, %v154
    %v159 = vpack.c.bf16 %v157, %v156
    %vm160 = vcmask 261120
    %v161 = vsel %vm160, %v126, 0.0
    %162 = vadd.xlane.f32.xlu0 %v161
    %v163 = vpop.xlane.xlu0 %162
    %v164 = vsel %vm160, %v129, 0.0
    %165 = vadd.xlane.f32.xlu0 %v164
    %v166 = vpop.xlane.xlu0 %165
    %v167 = vrcp.pop 32.0
    %v168 = vmul.f32 %v163, %v167
    %v169 = vmul.f32 %v166, %v167
    %v170 = vsub.f32 %v126, %v168
    %v171 = vsub.f32 %v129, %v169
    %v172 = vmul.f32 %v170, %v170
    %v173 = vmul.f32 %v171, %v171
    %v174 = vsel %vm160, %v172, 0.0
    %175 = vadd.xlane.f32.xlu0 %v174
    %v176 = vpop.xlane.xlu0 %175
    %v177 = vsel %vm160, %v173, 0.0
    %178 = vadd.xlane.f32.xlu0 %v177
    %v179 = vpop.xlane.xlu0 %178
    %v180 = vmul.f32 %v176, %v167
    %v181 = vmul.f32 %v179, %v167
    %v182 = vadd.f32 %v180, 1e-05
    %v183 = vadd.f32 %v181, 1e-05
    %v184 = vrsqrt.pop %v182
    %v185 = vrsqrt.pop %v183
    %v186 = vmul.f32 %v170, %v184
    %v187 = vmul.f32 %v171, %v185
    %v188 = vlaneseq
    %v189 = vshrl.u32 %v188, 7
    %v190 = vsub.s32 2, %v189
    %v191 = vrot.slane %v148, %v190
    %v192 = vmul.f32 %v191, %v186
    %v193 = vmul.f32 %v191, %v187
    %v194 = vlaneseq
    %v195 = vshrl.u32 %v194, 7
    %v196 = vsub.s32 3, %v195
    %v197 = vrot.slane %v148, %v196
    %v198 = vadd.f32 %v192, %v197
    %v199 = vadd.f32 %v193, %v197
    %v200 = vpack.c.bf16 %v199, %v198
    %v205 = vunpack.c.l.b16 %v150
    %v206 = vunpack.c.l.b16 %v151
    %v207 = vunpack.c.l.b16 %v152
    %v208 = vunpack.c.l.b16 %v153
    %v209 = vpack.c.b16 %v206, %v205
    %v210 = vpack.c.b16 %v208, %v207
    %v214 = vsel %vm160, %v200, 0
    %216 = vmatprep.subr.bf16.mxu0 0
    %217 = vmatpush1.bf16.msra.mxu0 0
    %218 = vmatprep.subr.bf16.mxu0 0
    %219 = vmatpush1.bf16.msra.mxu0 0
    %220 = vmatprep.subr.bf16.mxu0 0
    %221 = vmatpush1.bf16.msra.mxu0 0
    %222 = vmatprep.subr.bf16.mxu0 0
    %223 = vmatpush1.bf16.msra.mxu0 0
    %224 = vmatprep.subr.bf16.mxu0 0
    %225 = vmatpush1.bf16.msra.mxu0 0
    %226 = vmatprep.subr.bf16.mxu0 0
    %227 = vmatpush1.bf16.msra.mxu0 0
    %228 = vmatprep.subr.bf16.mxu0 0
    %229 = vmatpush1.bf16.msra.mxu0 %v210
    %230 = vmatprep.subr.bf16.mxu0 0
    %231 = vmatpush1.bf16.msra.mxu0 %v209
    %232 = vmatprep.subr.bf16.mxu0 0
    %233 = vmatpush2.bf16.msra.mxu0 0
    %234 = vmatprep.subr.bf16.mxu0 0
    %235 = vmatpush2.bf16.msra.mxu0 0
    %236 = vmatprep.subr.bf16.mxu0 0
    %237 = vmatpush2.bf16.msra.mxu0 0
    %238 = vmatprep.subr.bf16.mxu0 0
    %239 = vmatpush2.bf16.msra.mxu0 0
    %240 = vmatprep.subr.bf16.mxu0 0
    %241 = vmatpush2.bf16.msra.mxu0 0
    %242 = vmatprep.subr.bf16.mxu0 0
    %243 = vmatpush2.bf16.msra.mxu0 0
    %244 = vmatprep.subr.bf16.mxu0 0
    %245 = vmatpush2.bf16.msra.mxu0 0
    %246 = vmatprep.subr.bf16.mxu0 0
    %247 = vmatpush2.bf16.msra.mxu0 0
    %248 = vmatprep.mubr.bf16.mxu0 0
    %249 = vmatmul.mubr.bf16.gmra.mxu0 %v214
    %v250 = vpop.f32.mrf.mxu0
    %v251 = vadd.f32 0.0, %v250
    %v252 = vpop.f32.mrf.mxu0
    %v253 = vpop.f32.mrf.mxu0
    %v254 = vadd.f32 0.0, %v253
    %v255 = vpop.f32.mrf.mxu0
    %256 = vdwg.mxu0
    %v257 = vmul.f32 %v251, %v132
    %v258 = vmul.f32 %v254, %v133
    %v259 = vmul.f32 %v251, %v134
    %v260 = vmul.f32 %v254, %v135
    %v261 = vmul.f32 %v251, %v136
    %v262 = vmul.f32 %v254, %v137
    %v263 = vmul.f32 %v251, %v138
    %v264 = vmul.f32 %v254, %v139
    %v265 = vpack.c.bf16 %v258, %v257
    %v266 = vpack.c.bf16 %v260, %v259
    %v267 = vpack.c.bf16 %v262, %v261
    %v268 = vpack.c.bf16 %v264, %v263
    %v269 = vpack.c.bf16 %v254, %v251
    %271 = vrot.lane.b32.xlu0 %v269, 96
    %v272 = vpop.permute.xlu0 %271
    %v274 = vsel %vm160, %v265, 0
    %v277 = vsel %vm160, %v266, 0
    %v280 = vsel %vm160, %v267, 0
    %v283 = vsel %vm160, %v268, 0
    %v286 = vsel %vm160, %v272, 0
    %288 = vmatprep.subr.bf16.mxu0 0
    %289 = vmatpush1.bf16.xpose.msra.mxu0 0
    %290 = vmatprep.subr.bf16.mxu0 0
    %291 = vmatpush1.bf16.xpose.msra.mxu0 0
    %292 = vmatprep.subr.bf16.mxu0 0
    %293 = vmatpush1.bf16.xpose.msra.mxu0 0
    %294 = vmatprep.subr.bf16.mxu0 0
    %295 = vmatpush1.bf16.xpose.msra.mxu0 0
    %296 = vmatprep.subr.bf16.mxu0 0
    %297 = vmatpush1.bf16.xpose.msra.mxu0 0
    %298 = vmatprep.subr.bf16.mxu0 0
    %299 = vmatpush1.bf16.xpose.msra.mxu0 0
    %300 = vmatprep.subr.bf16.mxu0 0
    %301 = vmatpush1.bf16.xpose.msra.mxu0 0
    %302 = vmatprep.subr.bf16.mxu0 0
    %303 = vmatpush1.bf16.xpose.msra.mxu0 %v286
    %304 = vmatprep.subr.bf16.mxu0 0
    %305 = vmatpush2.bf16.xpose.msra.mxu0 0
    %306 = vmatprep.subr.bf16.mxu0 0
    %307 = vmatpush2.bf16.xpose.msra.mxu0 0
    %308 = vmatprep.subr.bf16.mxu0 0
    %309 = vmatpush2.bf16.xpose.msra.mxu0 0
    %310 = vmatprep.subr.bf16.mxu0 0
    %311 = vmatpush2.bf16.xpose.msra.mxu0 0
    %312 = vmatprep.subr.bf16.mxu0 0
    %313 = vmatpush2.bf16.xpose.msra.mxu0 0
    %314 = vmatprep.subr.bf16.mxu0 0
    %315 = vmatpush2.bf16.xpose.msra.mxu0 0
    %316 = vmatprep.subr.bf16.mxu0 0
    %317 = vmatpush2.bf16.xpose.msra.mxu0 0
    %318 = vmatprep.subr.bf16.mxu0 0
    %319 = vmatpush2.bf16.xpose.msra.mxu0 0
    %320 = vmatprep.mubr.bf16.mxu0 0
    %321 = vmatmul.mubr.bf16.gmra.mxu0 %v274
    %v322 = vpop.f32.mrf.mxu0
    %v323 = vadd.f32 %v140, %v322
    %v324 = vpop.f32.mrf.mxu0
    %v325 = vpop.f32.mrf.mxu0
    %v326 = vadd.f32 %v141, %v325
    %v327 = vpop.f32.mrf.mxu0
    %328 = vmatprep.mubr.bf16.mxu0 0
    %329 = vmatmul.mubr.bf16.gmra.mxu0 %v277
    %v330 = vpop.f32.mrf.mxu0
    %v331 = vadd.f32 %v142, %v330
    %v332 = vpop.f32.mrf.mxu0
    %v333 = vpop.f32.mrf.mxu0
    %v334 = vadd.f32 %v143, %v333
    %v335 = vpop.f32.mrf.mxu0
    %336 = vmatprep.mubr.bf16.mxu0 0
    %337 = vmatmul.mubr.bf16.gmra.mxu0 %v280
    %v338 = vpop.f32.mrf.mxu0
    %v339 = vadd.f32 %v144, %v338
    %v340 = vpop.f32.mrf.mxu0
    %v341 = vpop.f32.mrf.mxu0
    %v342 = vadd.f32 %v145, %v341
    %v343 = vpop.f32.mrf.mxu0
    %344 = vmatprep.mubr.bf16.mxu0 0
    %345 = vmatmul.mubr.bf16.gmra.mxu0 %v283
    %v346 = vpop.f32.mrf.mxu0
    %v347 = vadd.f32 %v146, %v346
    %v348 = vpop.f32.mrf.mxu0
    %v349 = vpop.f32.mrf.mxu0
    %v350 = vadd.f32 %v147, %v349
    %v351 = vpop.f32.mrf.mxu0
    %352 = vdwg.mxu0
    %vm353 = vcmask 130048
    %v354 = vsel %vm353, %v323, -inf
    %355 = vmax.xlane.f32.xlu0 %v354
    %v356 = vpop.xlane.xlu0 %355
    %v357 = vsel %vm353, %v326, -inf
    %358 = vmax.xlane.f32.xlu0 %v357
    %v359 = vpop.xlane.xlu0 %358
    %v360 = vsel %vm353, %v331, -inf
    %361 = vmax.xlane.f32.xlu0 %v360
    %v362 = vpop.xlane.xlu0 %361
    %v363 = vsel %vm353, %v334, -inf
    %364 = vmax.xlane.f32.xlu0 %v363
    %v365 = vpop.xlane.xlu0 %364
    %v366 = vsel %vm353, %v339, -inf
    %367 = vmax.xlane.f32.xlu0 %v366
    %v368 = vpop.xlane.xlu0 %367
    %v369 = vsel %vm353, %v342, -inf
    %370 = vmax.xlane.f32.xlu0 %v369
    %v371 = vpop.xlane.xlu0 %370
    %v372 = vsel %vm353, %v347, -inf
    %373 = vmax.xlane.f32.xlu0 %v372
    %v374 = vpop.xlane.xlu0 %373
    %v375 = vsel %vm353, %v350, -inf
    %376 = vmax.xlane.f32.xlu0 %v375
    %v377 = vpop.xlane.xlu0 %376
    %v378 = vsub.f32 %v323, %v356
    %v379 = vsub.f32 %v326, %v359
    %v380 = vsub.f32 %v331, %v362
    %v381 = vsub.f32 %v334, %v365
    %v382 = vsub.f32 %v339, %v368
    %v383 = vsub.f32 %v342, %v371
    %v384 = vsub.f32 %v347, %v374
    %v385 = vsub.f32 %v350, %v377
    %v386 = vmul.f32 %v378, 1.442695
    %v387 = vpow.pop %v386
    %v388 = vmul.f32 %v379, 1.442695
    %v389 = vpow.pop %v388
    %v390 = vmul.f32 %v380, 1.442695
    %v391 = vpow.pop %v390
    %v392 = vmul.f32 %v381, 1.442695
    %v393 = vpow.pop %v392
    %v394 = vmul.f32 %v382, 1.442695
    %v395 = vpow.pop %v394
    %v396 = vmul.f32 %v383, 1.442695
    %v397 = vpow.pop %v396
    %v398 = vmul.f32 %v384, 1.442695
    %v399 = vpow.pop %v398
    %v400 = vmul.f32 %v385, 1.442695
    %v401 = vpow.pop %v400
    %v402 = vsel %vm353, %v387, 0.0
    %403 = vadd.xlane.f32.xlu0 %v402
    %v404 = vpop.xlane.xlu0 %403
    %v405 = vsel %vm353, %v389, 0.0
    %406 = vadd.xlane.f32.xlu0 %v405
    %v407 = vpop.xlane.xlu0 %406
    %v408 = vsel %vm353, %v391, 0.0
    %409 = vadd.xlane.f32.xlu0 %v408
    %v410 = vpop.xlane.xlu0 %409
    %v411 = vsel %vm353, %v393, 0.0
    %412 = vadd.xlane.f32.xlu0 %v411
    %v413 = vpop.xlane.xlu0 %412
    %v414 = vsel %vm353, %v395, 0.0
    %415 = vadd.xlane.f32.xlu0 %v414
    %v416 = vpop.xlane.xlu0 %415
    %v417 = vsel %vm353, %v397, 0.0
    %418 = vadd.xlane.f32.xlu0 %v417
    %v419 = vpop.xlane.xlu0 %418
    %v420 = vsel %vm353, %v399, 0.0
    %421 = vadd.xlane.f32.xlu0 %v420
    %v422 = vpop.xlane.xlu0 %421
    %v423 = vsel %vm353, %v401, 0.0
    %424 = vadd.xlane.f32.xlu0 %v423
    %v425 = vpop.xlane.xlu0 %424
    %v426 = vrcp.pop %v404
    %v427 = vrcp.pop %v407
    %v428 = vrcp.pop %v410
    %v429 = vrcp.pop %v413
    %v430 = vrcp.pop %v416
    %v431 = vrcp.pop %v419
    %v432 = vrcp.pop %v422
    %v433 = vrcp.pop %v425
    %v434 = vmul.f32 %v387, %v426
    %v435 = vmul.f32 %v389, %v427
    %v436 = vmul.f32 %v391, %v428
    %v437 = vmul.f32 %v393, %v429
    %v438 = vmul.f32 %v395, %v430
    %v439 = vmul.f32 %v397, %v431
    %v440 = vmul.f32 %v399, %v432
    %v441 = vmul.f32 %v401, %v433
    %v442 = vpack.c.bf16 %v435, %v434
    %v443 = vpack.c.bf16 %v437, %v436
    %v444 = vpack.c.bf16 %v439, %v438
    %v445 = vpack.c.bf16 %v441, %v440
    %446 = vrot.lane.b32.xlu0 %v269, 64
    %v447 = vpop.permute.xlu0 %446
    %v450 = vsel %vm353, %v442, 0
    %v453 = vsel %vm353, %v443, 0
    %v456 = vsel %vm353, %v444, 0
    %v459 = vsel %vm353, %v445, 0
    %461 = vmatprep.subr.bf16.mxu0 0
    %462 = vmatpush1.bf16.msra.mxu0 0
    %463 = vmatprep.subr.bf16.mxu0 0
    %464 = vmatpush1.bf16.msra.mxu0 0
    %465 = vmatprep.subr.bf16.mxu0 0
    %466 = vmatpush1.bf16.msra.mxu0 0
    %467 = vmatprep.subr.bf16.mxu0 0
    %468 = vmatpush1.bf16.msra.mxu0 0
    %469 = vmatprep.subr.bf16.mxu0 0
    %470 = vmatpush1.bf16.msra.mxu0 0
    %471 = vmatprep.subr.bf16.mxu0 0
    %472 = vmatpush1.bf16.msra.mxu0 0
    %473 = vmatprep.subr.bf16.mxu0 0
    %474 = vmatpush1.bf16.msra.mxu0 0
    %475 = vmatprep.subr.bf16.mxu0 0
    %476 = vmatpush1.bf16.msra.mxu0 %v447
    %477 = vmatprep.subr.bf16.mxu0 0
    %478 = vmatpush2.bf16.msra.mxu0 0
    %479 = vmatprep.subr.bf16.mxu0 0
    %480 = vmatpush2.bf16.msra.mxu0 0
    %481 = vmatprep.subr.bf16.mxu0 0
    %482 = vmatpush2.bf16.msra.mxu0 0
    %483 = vmatprep.subr.bf16.mxu0 0
    %484 = vmatpush2.bf16.msra.mxu0 0
    %485 = vmatprep.subr.bf16.mxu0 0
    %486 = vmatpush2.bf16.msra.mxu0 0
    %487 = vmatprep.subr.bf16.mxu0 0
    %488 = vmatpush2.bf16.msra.mxu0 0
    %489 = vmatprep.subr.bf16.mxu0 0
    %490 = vmatpush2.bf16.msra.mxu0 0
    %491 = vmatprep.subr.bf16.mxu0 0
    %492 = vmatpush2.bf16.msra.mxu0 0
    %493 = vmatprep.mubr.bf16.mxu0 0
    %494 = vmatmul.mubr.bf16.gmra.mxu0 %v450
    %v495 = vpop.f32.mrf.mxu0
    %v496 = vadd.f32 0.0, %v495
    %v497 = vpop.f32.mrf.mxu0
    %v498 = vpop.f32.mrf.mxu0
    %v499 = vadd.f32 0.0, %v498
    %v500 = vpop.f32.mrf.mxu0
    %501 = vmatprep.mubr.bf16.mxu0 0
    %502 = vmatmul.mubr.bf16.gmra.mxu0 %v453
    %v503 = vpop.f32.mrf.mxu0
    %v504 = vadd.f32 0.0, %v503
    %v505 = vpop.f32.mrf.mxu0
    %v506 = vpop.f32.mrf.mxu0
    %v507 = vadd.f32 0.0, %v506
    %v508 = vpop.f32.mrf.mxu0
    %509 = vmatprep.mubr.bf16.mxu0 0
    %510 = vmatmul.mubr.bf16.gmra.mxu0 %v456
    %v511 = vpop.f32.mrf.mxu0
    %v512 = vadd.f32 0.0, %v511
    %v513 = vpop.f32.mrf.mxu0
    %v514 = vpop.f32.mrf.mxu0
    %v515 = vadd.f32 0.0, %v514
    %v516 = vpop.f32.mrf.mxu0
    %517 = vmatprep.mubr.bf16.mxu0 0
    %518 = vmatmul.mubr.bf16.gmra.mxu0 %v459
    %v519 = vpop.f32.mrf.mxu0
    %v520 = vadd.f32 0.0, %v519
    %v521 = vpop.f32.mrf.mxu0
    %v522 = vpop.f32.mrf.mxu0
    %v523 = vadd.f32 0.0, %v522
    %v524 = vpop.f32.mrf.mxu0
    %525 = vdwg.mxu0
    %v526 = vmul.f32 %v496, %v132
    %v527 = vmul.f32 %v499, %v133
    %v528 = vmul.f32 %v504, %v134
    %v529 = vmul.f32 %v507, %v135
    %v530 = vmul.f32 %v512, %v136
    %v531 = vmul.f32 %v515, %v137
    %v532 = vmul.f32 %v520, %v138
    %v533 = vmul.f32 %v523, %v139
    %v534 = vadd.f32 %v526, %v528
    %v535 = vadd.f32 %v527, %v529
    %v536 = vadd.f32 %v534, %v530
    %v537 = vadd.f32 %v535, %v531
    %v538 = vadd.f32 %v536, %v532
    %v539 = vadd.f32 %v537, %v533
    %v540 = vpack.c.bf16 %v539, %v538
    %v541 = vlaneseq
    %v542 = vshrl.u32 %v541, 7
    %v543 = vsub.s32 6, %v542
    %v544 = vrot.slane %v148, %v543
    %v546 = vsel %vm160, %v540, 0
    %548 = vmatprep.subr.bf16.mxu0 0
    %549 = vmatpush1.bf16.msra.mxu0 0
    %550 = vmatprep.subr.bf16.mxu0 0
    %551 = vmatpush1.bf16.msra.mxu0 0
    %552 = vmatprep.subr.bf16.mxu0 0
    %553 = vmatpush1.bf16.msra.mxu0 0
    %554 = vmatprep.subr.bf16.mxu0 0
    %555 = vmatpush1.bf16.msra.mxu0 0
    %556 = vmatprep.subr.bf16.mxu0 0
    %557 = vmatpush1.bf16.msra.mxu0 0
    %558 = vmatprep.subr.bf16.mxu0 0
    %559 = vmatpush1.bf16.msra.mxu0 0
    %560 = vmatprep.subr.bf16.mxu0 0
    %561 = vmatpush1.bf16.msra.mxu0 %v159
    %562 = vmatprep.subr.bf16.mxu0 0
    %563 = vmatpush1.bf16.msra.mxu0 %v158
    %564 = vmatprep.subr.bf16.mxu0 0
    %565 = vmatpush2.bf16.msra.mxu0 0
    %566 = vmatprep.subr.bf16.mxu0 0
    %567 = vmatpush2.bf16.msra.mxu0 0
    %568 = vmatprep.subr.bf16.mxu0 0
    %569 = vmatpush2.bf16.msra.mxu0 0
    %570 = vmatprep.subr.bf16.mxu0 0
    %571 = vmatpush2.bf16.msra.mxu0 0
    %572 = vmatprep.subr.bf16.mxu0 0
    %573 = vmatpush2.bf16.msra.mxu0 0
    %574 = vmatprep.subr.bf16.mxu0 0
    %575 = vmatpush2.bf16.msra.mxu0 0
    %576 = vmatprep.subr.bf16.mxu0 0
    %577 = vmatpush2.bf16.msra.mxu0 0
    %578 = vmatprep.subr.bf16.mxu0 0
    %579 = vmatpush2.bf16.msra.mxu0 0
    %580 = vmatprep.mubr.bf16.mxu0 0
    %581 = vmatmul.mubr.bf16.gmra.mxu0 %v546
    %v582 = vpop.f32.mrf.mxu0
    %v583 = vadd.f32 %v544, %v582
    %v584 = vpop.f32.mrf.mxu0
    %v585 = vpop.f32.mrf.mxu0
    %v586 = vadd.f32 %v544, %v585
    %v587 = vpop.f32.mrf.mxu0
    %588 = vdwg.mxu0
    %v589 = vadd.f32 %v126, %v583
    %v590 = vadd.f32 %v129, %v586
    %v591 = vsel %vm160, %v589, 0.0
    %592 = vadd.xlane.f32.xlu0 %v591
    %v593 = vpop.xlane.xlu0 %592
    %v594 = vsel %vm160, %v590, 0.0
    %595 = vadd.xlane.f32.xlu0 %v594
    %v596 = vpop.xlane.xlu0 %595
    %v597 = vmul.f32 %v593, %v167
    %v598 = vmul.f32 %v596, %v167
    %v599 = vsub.f32 %v589, %v597
    %v600 = vsub.f32 %v590, %v598
    %v601 = vmul.f32 %v599, %v599
    %v602 = vmul.f32 %v600, %v600
    %v603 = vsel %vm160, %v601, 0.0
    %604 = vadd.xlane.f32.xlu0 %v603
    %v605 = vpop.xlane.xlu0 %604
    %v606 = vsel %vm160, %v602, 0.0
    %607 = vadd.xlane.f32.xlu0 %v606
    %v608 = vpop.xlane.xlu0 %607
    %v609 = vmul.f32 %v605, %v167
    %v610 = vmul.f32 %v608, %v167
    %v611 = vadd.f32 %v609, 1e-05
    %v612 = vadd.f32 %v610, 1e-05
    %v613 = vrsqrt.pop %v611
    %v614 = vrsqrt.pop %v612
    %v615 = vmul.f32 %v599, %v613
    %v616 = vmul.f32 %v600, %v614
    %v617 = vlaneseq
    %v618 = vshrl.u32 %v617, 7
    %v619 = vsub.s32 4, %v618
    %v620 = vrot.slane %v148, %v619
    %v621 = vmul.f32 %v620, %v615
    %v622 = vmul.f32 %v620, %v616
    %v623 = vlaneseq
    %v624 = vshrl.u32 %v623, 7
    %v625 = vsub.s32 5, %v624
    %v626 = vrot.slane %v148, %v625
    %v627 = vadd.f32 %v621, %v626
    %v628 = vadd.f32 %v622, %v626
    %v629 = vpack.c.bf16 %v628, %v627
    %v631 = vsel %vm160, %v629, 0
    %633 = vmatprep.subr.bf16.mxu0 0
    %634 = vmatpush1.bf16.msra.mxu0 0
    %635 = vmatprep.subr.bf16.mxu0 0
    %636 = vmatpush1.bf16.msra.mxu0 0
    %637 = vmatprep.subr.bf16.mxu0 0
    %638 = vmatpush1.bf16.msra.mxu0 0
    %639 = vmatprep.subr.bf16.mxu0 0
    %640 = vmatpush1.bf16.msra.mxu0 0
    %641 = vmatprep.subr.bf16.mxu0 0
    %642 = vmatpush1.bf16.msra.mxu0 0
    %643 = vmatprep.subr.bf16.mxu0 0
    %644 = vmatpush1.bf16.msra.mxu0 0
    %645 = vmatprep.subr.bf16.mxu0 0
    %646 = vmatpush1.bf16.msra.mxu0 %v210
    %647 = vmatprep.subr.bf16.mxu0 0
    %648 = vmatpush1.bf16.msra.mxu0 %v209
    %649 = vmatprep.subr.bf16.mxu0 0
    %650 = vmatpush2.bf16.msra.mxu0 0
    %651 = vmatprep.subr.bf16.mxu0 0
    %652 = vmatpush2.bf16.msra.mxu0 0
    %653 = vmatprep.subr.bf16.mxu0 0
    %654 = vmatpush2.bf16.msra.mxu0 0
    %655 = vmatprep.subr.bf16.mxu0 0
    %656 = vmatpush2.bf16.msra.mxu0 0
    %657 = vmatprep.subr.bf16.mxu0 0
    %658 = vmatpush2.bf16.msra.mxu0 0
    %659 = vmatprep.subr.bf16.mxu0 0
    %660 = vmatpush2.bf16.msra.mxu0 0
    %661 = vmatprep.subr.bf16.mxu0 0
    %662 = vmatpush2.bf16.msra.mxu0 0
    %663 = vmatprep.subr.bf16.mxu0 0
    %664 = vmatpush2.bf16.msra.mxu0 0
    %665 = vmatprep.mubr.bf16.mxu0 0
    %666 = vmatmul.mubr.bf16.gmra.mxu0 %v631
    %v667 = vpop.f32.mrf.mxu0
    %v668 = vadd.f32 0.0, %v667
    %v669 = vpop.f32.mrf.mxu0
    %v670 = vpop.f32.mrf.mxu0
    %v671 = vadd.f32 0.0, %v670
    %v672 = vpop.f32.mrf.mxu0
    %673 = vdwg.mxu0
    %v674 = vmul.f32 %v668, %v132
    %v675 = vmul.f32 %v671, %v133
    %v676 = vmul.f32 %v668, %v134
    %v677 = vmul.f32 %v671, %v135
    %v678 = vmul.f32 %v668, %v136
    %v679 = vmul.f32 %v671, %v137
    %v680 = vmul.f32 %v668, %v138
    %v681 = vmul.f32 %v671, %v139
    %v682 = vpack.c.bf16 %v675, %v674
    %v683 = vpack.c.bf16 %v677, %v676
    %v684 = vpack.c.bf16 %v679, %v678
    %v685 = vpack.c.bf16 %v681, %v680
    %v686 = vpack.c.bf16 %v671, %v668
    %688 = vrot.lane.b32.xlu0 %v686, 96
    %v689 = vpop.permute.xlu0 %688
    %v691 = vsel %vm160, %v682, 0
    %v694 = vsel %vm160, %v683, 0
    %v697 = vsel %vm160, %v684, 0
    %v700 = vsel %vm160, %v685, 0
    %v703 = vsel %vm160, %v689, 0
    %705 = vmatprep.subr.bf16.mxu0 0
    %706 = vmatpush1.bf16.xpose.msra.mxu0 0
    %707 = vmatprep.subr.bf16.mxu0 0
    %708 = vmatpush1.bf16.xpose.msra.mxu0 0
    %709 = vmatprep.subr.bf16.mxu0 0
    %710 = vmatpush1.bf16.xpose.msra.mxu0 0
    %711 = vmatprep.subr.bf16.mxu0 0
    %712 = vmatpush1.bf16.xpose.msra.mxu0 0
    %713 = vmatprep.subr.bf16.mxu0 0
    %714 = vmatpush1.bf16.xpose.msra.mxu0 0
    %715 = vmatprep.subr.bf16.mxu0 0
    %716 = vmatpush1.bf16.xpose.msra.mxu0 0
    %717 = vmatprep.subr.bf16.mxu0 0
    %718 = vmatpush1.bf16.xpose.msra.mxu0 0
    %719 = vmatprep.subr.bf16.mxu0 0
    %720 = vmatpush1.bf16.xpose.msra.mxu0 %v703
    %721 = vmatprep.subr.bf16.mxu0 0
    %722 = vmatpush2.bf16.xpose.msra.mxu0 0
    %723 = vmatprep.subr.bf16.mxu0 0
    %724 = vmatpush2.bf16.xpose.msra.mxu0 0
    %725 = vmatprep.subr.bf16.mxu0 0
    %726 = vmatpush2.bf16.xpose.msra.mxu0 0
    %727 = vmatprep.subr.bf16.mxu0 0
    %728 = vmatpush2.bf16.xpose.msra.mxu0 0
    %729 = vmatprep.subr.bf16.mxu0 0
    %730 = vmatpush2.bf16.xpose.msra.mxu0 0
    %731 = vmatprep.subr.bf16.mxu0 0
    %732 = vmatpush2.bf16.xpose.msra.mxu0 0
    %733 = vmatprep.subr.bf16.mxu0 0
    %734 = vmatpush2.bf16.xpose.msra.mxu0 0
    %735 = vmatprep.subr.bf16.mxu0 0
    %736 = vmatpush2.bf16.xpose.msra.mxu0 0
    %737 = vmatprep.mubr.bf16.mxu0 0
    %738 = vmatmul.mubr.bf16.gmra.mxu0 %v691
    %v739 = vpop.f32.mrf.mxu0
    %v740 = vadd.f32 %v140, %v739
    %v741 = vpop.f32.mrf.mxu0
    %v742 = vpop.f32.mrf.mxu0
    %v743 = vadd.f32 %v141, %v742
    %v744 = vpop.f32.mrf.mxu0
    %745 = vmatprep.mubr.bf16.mxu0 0
    %746 = vmatmul.mubr.bf16.gmra.mxu0 %v694
    %v747 = vpop.f32.mrf.mxu0
    %v748 = vadd.f32 %v142, %v747
    %v749 = vpop.f32.mrf.mxu0
    %v750 = vpop.f32.mrf.mxu0
    %v751 = vadd.f32 %v143, %v750
    %v752 = vpop.f32.mrf.mxu0
    %753 = vmatprep.mubr.bf16.mxu0 0
    %754 = vmatmul.mubr.bf16.gmra.mxu0 %v697
    %v755 = vpop.f32.mrf.mxu0
    %v756 = vadd.f32 %v144, %v755
    %v757 = vpop.f32.mrf.mxu0
    %v758 = vpop.f32.mrf.mxu0
    %v759 = vadd.f32 %v145, %v758
    %v760 = vpop.f32.mrf.mxu0
    %761 = vmatprep.mubr.bf16.mxu0 0
    %762 = vmatmul.mubr.bf16.gmra.mxu0 %v700
    %v763 = vpop.f32.mrf.mxu0
    %v764 = vadd.f32 %v146, %v763
    %v765 = vpop.f32.mrf.mxu0
    %v766 = vpop.f32.mrf.mxu0
    %v767 = vadd.f32 %v147, %v766
    %v768 = vpop.f32.mrf.mxu0
    %769 = vdwg.mxu0
    %v770 = vsel %vm353, %v740, -inf
    %771 = vmax.xlane.f32.xlu0 %v770
    %v772 = vpop.xlane.xlu0 %771
    %v773 = vsel %vm353, %v743, -inf
    %774 = vmax.xlane.f32.xlu0 %v773
    %v775 = vpop.xlane.xlu0 %774
    %v776 = vsel %vm353, %v748, -inf
    %777 = vmax.xlane.f32.xlu0 %v776
    %v778 = vpop.xlane.xlu0 %777
    %v779 = vsel %vm353, %v751, -inf
    %780 = vmax.xlane.f32.xlu0 %v779
    %v781 = vpop.xlane.xlu0 %780
    %v782 = vsel %vm353, %v756, -inf
    %783 = vmax.xlane.f32.xlu0 %v782
    %v784 = vpop.xlane.xlu0 %783
    %v785 = vsel %vm353, %v759, -inf
    %786 = vmax.xlane.f32.xlu0 %v785
    %v787 = vpop.xlane.xlu0 %786
    %v788 = vsel %vm353, %v764, -inf
    %789 = vmax.xlane.f32.xlu0 %v788
    %v790 = vpop.xlane.xlu0 %789
    %v791 = vsel %vm353, %v767, -inf
    %792 = vmax.xlane.f32.xlu0 %v791
    %v793 = vpop.xlane.xlu0 %792
    %v794 = vsub.f32 %v740, %v772
    %v795 = vsub.f32 %v743, %v775
    %v796 = vsub.f32 %v748, %v778
    %v797 = vsub.f32 %v751, %v781
    %v798 = vsub.f32 %v756, %v784
    %v799 = vsub.f32 %v759, %v787
    %v800 = vsub.f32 %v764, %v790
    %v801 = vsub.f32 %v767, %v793
    %v802 = vmul.f32 %v794, 1.442695
    %v803 = vpow.pop %v802
    %v804 = vmul.f32 %v795, 1.442695
    %v805 = vpow.pop %v804
    %v806 = vmul.f32 %v796, 1.442695
    %v807 = vpow.pop %v806
    %v808 = vmul.f32 %v797, 1.442695
    %v809 = vpow.pop %v808
    %v810 = vmul.f32 %v798, 1.442695
    %v811 = vpow.pop %v810
    %v812 = vmul.f32 %v799, 1.442695
    %v813 = vpow.pop %v812
    %v814 = vmul.f32 %v800, 1.442695
    %v815 = vpow.pop %v814
    %v816 = vmul.f32 %v801, 1.442695
    %v817 = vpow.pop %v816
    %v818 = vsel %vm353, %v803, 0.0
    %819 = vadd.xlane.f32.xlu0 %v818
    %v820 = vpop.xlane.xlu0 %819
    %v821 = vsel %vm353, %v805, 0.0
    %822 = vadd.xlane.f32.xlu0 %v821
    %v823 = vpop.xlane.xlu0 %822
    %v824 = vsel %vm353, %v807, 0.0
    %825 = vadd.xlane.f32.xlu0 %v824
    %v826 = vpop.xlane.xlu0 %825
    %v827 = vsel %vm353, %v809, 0.0
    %828 = vadd.xlane.f32.xlu0 %v827
    %v829 = vpop.xlane.xlu0 %828
    %v830 = vsel %vm353, %v811, 0.0
    %831 = vadd.xlane.f32.xlu0 %v830
    %v832 = vpop.xlane.xlu0 %831
    %v833 = vsel %vm353, %v813, 0.0
    %834 = vadd.xlane.f32.xlu0 %v833
    %v835 = vpop.xlane.xlu0 %834
    %v836 = vsel %vm353, %v815, 0.0
    %837 = vadd.xlane.f32.xlu0 %v836
    %v838 = vpop.xlane.xlu0 %837
    %v839 = vsel %vm353, %v817, 0.0
    %840 = vadd.xlane.f32.xlu0 %v839
    %v841 = vpop.xlane.xlu0 %840
    %v842 = vrcp.pop %v820
    %v843 = vrcp.pop %v823
    %v844 = vrcp.pop %v826
    %v845 = vrcp.pop %v829
    %v846 = vrcp.pop %v832
    %v847 = vrcp.pop %v835
    %v848 = vrcp.pop %v838
    %v849 = vrcp.pop %v841
    %v850 = vmul.f32 %v803, %v842
    %v851 = vmul.f32 %v805, %v843
    %v852 = vmul.f32 %v807, %v844
    %v853 = vmul.f32 %v809, %v845
    %v854 = vmul.f32 %v811, %v846
    %v855 = vmul.f32 %v813, %v847
    %v856 = vmul.f32 %v815, %v848
    %v857 = vmul.f32 %v817, %v849
    %v858 = vpack.c.bf16 %v851, %v850
    %v859 = vpack.c.bf16 %v853, %v852
    %v860 = vpack.c.bf16 %v855, %v854
    %v861 = vpack.c.bf16 %v857, %v856
    %862 = vrot.lane.b32.xlu0 %v686, 64
    %v863 = vpop.permute.xlu0 %862
    %v866 = vsel %vm353, %v858, 0
    %v869 = vsel %vm353, %v859, 0
    %v872 = vsel %vm353, %v860, 0
    %v875 = vsel %vm353, %v861, 0
    %877 = vmatprep.subr.bf16.mxu0 0
    %878 = vmatpush1.bf16.msra.mxu0 0
    %879 = vmatprep.subr.bf16.mxu0 0
    %880 = vmatpush1.bf16.msra.mxu0 0
    %881 = vmatprep.subr.bf16.mxu0 0
    %882 = vmatpush1.bf16.msra.mxu0 0
    %883 = vmatprep.subr.bf16.mxu0 0
    %884 = vmatpush1.bf16.msra.mxu0 0
    %885 = vmatprep.subr.bf16.mxu0 0
    %886 = vmatpush1.bf16.msra.mxu0 0
    %887 = vmatprep.subr.bf16.mxu0 0
    %888 = vmatpush1.bf16.msra.mxu0 0
    %889 = vmatprep.subr.bf16.mxu0 0
    %890 = vmatpush1.bf16.msra.mxu0 0
    %891 = vmatprep.subr.bf16.mxu0 0
    %892 = vmatpush1.bf16.msra.mxu0 %v863
    %893 = vmatprep.subr.bf16.mxu0 0
    %894 = vmatpush2.bf16.msra.mxu0 0
    %895 = vmatprep.subr.bf16.mxu0 0
    %896 = vmatpush2.bf16.msra.mxu0 0
    %897 = vmatprep.subr.bf16.mxu0 0
    %898 = vmatpush2.bf16.msra.mxu0 0
    %899 = vmatprep.subr.bf16.mxu0 0
    %900 = vmatpush2.bf16.msra.mxu0 0
    %901 = vmatprep.subr.bf16.mxu0 0
    %902 = vmatpush2.bf16.msra.mxu0 0
    %903 = vmatprep.subr.bf16.mxu0 0
    %904 = vmatpush2.bf16.msra.mxu0 0
    %905 = vmatprep.subr.bf16.mxu0 0
    %906 = vmatpush2.bf16.msra.mxu0 0
    %907 = vmatprep.subr.bf16.mxu0 0
    %908 = vmatpush2.bf16.msra.mxu0 0
    %909 = vmatprep.mubr.bf16.mxu0 0
    %910 = vmatmul.mubr.bf16.gmra.mxu0 %v866
    %v911 = vpop.f32.mrf.mxu0
    %v912 = vadd.f32 0.0, %v911
    %v913 = vpop.f32.mrf.mxu0
    %v914 = vpop.f32.mrf.mxu0
    %v915 = vadd.f32 0.0, %v914
    %v916 = vpop.f32.mrf.mxu0
    %917 = vmatprep.mubr.bf16.mxu0 0
    %918 = vmatmul.mubr.bf16.gmra.mxu0 %v869
    %v919 = vpop.f32.mrf.mxu0
    %v920 = vadd.f32 0.0, %v919
    %v921 = vpop.f32.mrf.mxu0
    %v922 = vpop.f32.mrf.mxu0
    %v923 = vadd.f32 0.0, %v922
    %v924 = vpop.f32.mrf.mxu0
    %925 = vmatprep.mubr.bf16.mxu0 0
    %926 = vmatmul.mubr.bf16.gmra.mxu0 %v872
    %v927 = vpop.f32.mrf.mxu0
    %v928 = vadd.f32 0.0, %v927
    %v929 = vpop.f32.mrf.mxu0
    %v930 = vpop.f32.mrf.mxu0
    %v931 = vadd.f32 0.0, %v930
    %v932 = vpop.f32.mrf.mxu0
    %933 = vmatprep.mubr.bf16.mxu0 0
    %934 = vmatmul.mubr.bf16.gmra.mxu0 %v875
    %v935 = vpop.f32.mrf.mxu0
    %v936 = vadd.f32 0.0, %v935
    %v937 = vpop.f32.mrf.mxu0
    %v938 = vpop.f32.mrf.mxu0
    %v939 = vadd.f32 0.0, %v938
    %v940 = vpop.f32.mrf.mxu0
    %941 = vdwg.mxu0
    %v942 = vmul.f32 %v912, %v132
    %v943 = vmul.f32 %v915, %v133
    %v944 = vmul.f32 %v920, %v134
    %v945 = vmul.f32 %v923, %v135
    %v946 = vmul.f32 %v928, %v136
    %v947 = vmul.f32 %v931, %v137
    %v948 = vmul.f32 %v936, %v138
    %v949 = vmul.f32 %v939, %v139
    %v950 = vadd.f32 %v942, %v944
    %v951 = vadd.f32 %v943, %v945
    %v952 = vadd.f32 %v950, %v946
    %v953 = vadd.f32 %v951, %v947
    %v954 = vadd.f32 %v952, %v948
    %v955 = vadd.f32 %v953, %v949
    %v956 = vpack.c.bf16 %v955, %v954
    %v958 = vsel %vm160, %v956, 0
    %960 = vmatprep.subr.bf16.mxu0 0
    %961 = vmatpush1.bf16.msra.mxu0 0
    %962 = vmatprep.subr.bf16.mxu0 0
    %963 = vmatpush1.bf16.msra.mxu0 0
    %964 = vmatprep.subr.bf16.mxu0 0
    %965 = vmatpush1.bf16.msra.mxu0 0
    %966 = vmatprep.subr.bf16.mxu0 0
    %967 = vmatpush1.bf16.msra.mxu0 0
    %968 = vmatprep.subr.bf16.mxu0 0
    %969 = vmatpush1.bf16.msra.mxu0 0
    %970 = vmatprep.subr.bf16.mxu0 0
    %971 = vmatpush1.bf16.msra.mxu0 0
    %972 = vmatprep.subr.bf16.mxu0 0
    %973 = vmatpush1.bf16.msra.mxu0 %v159
    %974 = vmatprep.subr.bf16.mxu0 0
    %975 = vmatpush1.bf16.msra.mxu0 %v158
    %976 = vmatprep.subr.bf16.mxu0 0
    %977 = vmatpush2.bf16.msra.mxu0 0
    %978 = vmatprep.subr.bf16.mxu0 0
    %979 = vmatpush2.bf16.msra.mxu0 0
    %980 = vmatprep.subr.bf16.mxu0 0
    %981 = vmatpush2.bf16.msra.mxu0 0
    %982 = vmatprep.subr.bf16.mxu0 0
    %983 = vmatpush2.bf16.msra.mxu0 0
    %984 = vmatprep.subr.bf16.mxu0 0
    %985 = vmatpush2.bf16.msra.mxu0 0
    %986 = vmatprep.subr.bf16.mxu0 0
    %987 = vmatpush2.bf16.msra.mxu0 0
    %988 = vmatprep.subr.bf16.mxu0 0
    %989 = vmatpush2.bf16.msra.mxu0 0
    %990 = vmatprep.subr.bf16.mxu0 0
    %991 = vmatpush2.bf16.msra.mxu0 0
    %992 = vmatprep.mubr.bf16.mxu0 0
    %993 = vmatmul.mubr.bf16.gmra.mxu0 %v958
    %v994 = vpop.f32.mrf.mxu0
    %v995 = vadd.f32 %v544, %v994
    %v996 = vpop.f32.mrf.mxu0
    %v997 = vpop.f32.mrf.mxu0
    %v998 = vadd.f32 %v544, %v997
    %v999 = vpop.f32.mrf.mxu0
    %1000 = vdwg.mxu0
    %v1001 = vadd.f32 %v589, %v995
    %v1002 = vadd.f32 %v590, %v998
    %v1003 = vld [vmem:[%s2 + $0x10] sm:$0xf]
    %v1004 = vld [vmem:[%s2 + $0x14] sm:$0xf]
    %v1005 = vld [vmem:[%s2 + $0x18] sm:$0xf]
    %v1006 = vld [vmem:[%s2 + $0x1c] sm:$0xf]
    %v1007 = vld [vmem:[%s1 + $0x68] sm:$0xff]
    %v1008 = vld [vmem:[%s1 + $0x70] sm:$0xff]
    %v1009 = vld [vmem:[%s1 + $0x78] sm:$0xff]
    %v1010 = vld [vmem:[%s1 + $0x80] sm:$0xff]
    %v1011 = vpack.c.bf16 %v1008, %v1007
    %v1012 = vpack.c.bf16 %v1010, %v1009
    %v1013 = vsel %vm160, %v1001, 0.0
    %1014 = vadd.xlane.f32.xlu0 %v1013
    %v1015 = vpop.xlane.xlu0 %1014
    %v1016 = vsel %vm160, %v1002, 0.0
    %1017 = vadd.xlane.f32.xlu0 %v1016
    %v1018 = vpop.xlane.xlu0 %1017
    %v1019 = vmul.f32 %v1015, %v167
    %v1020 = vmul.f32 %v1018, %v167
    %v1021 = vsub.f32 %v1001, %v1019
    %v1022 = vsub.f32 %v1002, %v1020
    %v1023 = vmul.f32 %v1021, %v1021
    %v1024 = vmul.f32 %v1022, %v1022
    %v1025 = vsel %vm160, %v1023, 0.0
    %1026 = vadd.xlane.f32.xlu0 %v1025
    %v1027 = vpop.xlane.xlu0 %1026
    %v1028 = vsel %vm160, %v1024, 0.0
    %1029 = vadd.xlane.f32.xlu0 %v1028
    %v1030 = vpop.xlane.xlu0 %1029
    %v1031 = vmul.f32 %v1027, %v167
    %v1032 = vmul.f32 %v1030, %v167
    %v1033 = vadd.f32 %v1031, 1e-05
    %v1034 = vadd.f32 %v1032, 1e-05
    %v1035 = vrsqrt.pop %v1033
    %v1036 = vrsqrt.pop %v1034
    %v1037 = vmul.f32 %v1021, %v1035
    %v1038 = vmul.f32 %v1022, %v1036
    %v1039 = vlaneseq
    %v1040 = vshrl.u32 %v1039, 7
    %v1041 = vsub.s32 7, %v1040
    %v1042 = vrot.slane %v148, %v1041
    %v1043 = vmul.f32 %v1042, %v1037
    %v1044 = vmul.f32 %v1042, %v1038
    %v1045 = vlaneseq
    %v1046 = vshrl.u32 %v1045, 7
    %v1047 = vsub.s32 0, %v1046
    %v1048 = vrot.slane %v149, %v1047
    %v1049 = vadd.f32 %v1043, %v1048
    %v1050 = vadd.f32 %v1044, %v1048
    %v1051 = vpack.c.bf16 %v1050, %v1049
    %v1056 = vunpack.c.l.b16 %v1003
    %v1057 = vunpack.c.l.b16 %v1004
    %v1058 = vunpack.c.l.b16 %v1005
    %v1059 = vunpack.c.l.b16 %v1006
    %v1060 = vpack.c.b16 %v1057, %v1056
    %v1061 = vpack.c.b16 %v1059, %v1058
    %v1065 = vsel %vm160, %v1051, 0
    %1067 = vmatprep.subr.bf16.mxu0 0
    %1068 = vmatpush1.bf16.msra.mxu0 0
    %1069 = vmatprep.subr.bf16.mxu0 0
    %1070 = vmatpush1.bf16.msra.mxu0 0
    %1071 = vmatprep.subr.bf16.mxu0 0
    %1072 = vmatpush1.bf16.msra.mxu0 0
    %1073 = vmatprep.subr.bf16.mxu0 0
    %1074 = vmatpush1.bf16.msra.mxu0 0
    %1075 = vmatprep.subr.bf16.mxu0 0
    %1076 = vmatpush1.bf16.msra.mxu0 0
    %1077 = vmatprep.subr.bf16.mxu0 0
    %1078 = vmatpush1.bf16.msra.mxu0 0
    %1079 = vmatprep.subr.bf16.mxu0 0
    %1080 = vmatpush1.bf16.msra.mxu0 %v1061
    %1081 = vmatprep.subr.bf16.mxu0 0
    %1082 = vmatpush1.bf16.msra.mxu0 %v1060
    %1083 = vmatprep.subr.bf16.mxu0 0
    %1084 = vmatpush2.bf16.msra.mxu0 0
    %1085 = vmatprep.subr.bf16.mxu0 0
    %1086 = vmatpush2.bf16.msra.mxu0 0
    %1087 = vmatprep.subr.bf16.mxu0 0
    %1088 = vmatpush2.bf16.msra.mxu0 0
    %1089 = vmatprep.subr.bf16.mxu0 0
    %1090 = vmatpush2.bf16.msra.mxu0 0
    %1091 = vmatprep.subr.bf16.mxu0 0
    %1092 = vmatpush2.bf16.msra.mxu0 0
    %1093 = vmatprep.subr.bf16.mxu0 0
    %1094 = vmatpush2.bf16.msra.mxu0 0
    %1095 = vmatprep.subr.bf16.mxu0 0
    %1096 = vmatpush2.bf16.msra.mxu0 0
    %1097 = vmatprep.subr.bf16.mxu0 0
    %1098 = vmatpush2.bf16.msra.mxu0 0
    %1099 = vmatprep.mubr.bf16.mxu0 0
    %1100 = vmatmul.mubr.bf16.gmra.mxu0 %v1065
    %v1101 = vpop.f32.mrf.mxu0
    %v1102 = vadd.f32 0.0, %v1101
    %v1103 = vpop.f32.mrf.mxu0
    %v1104 = vpop.f32.mrf.mxu0
    %v1105 = vadd.f32 0.0, %v1104
    %v1106 = vpop.f32.mrf.mxu0
    %1107 = vdwg.mxu0
    %v1108 = vmul.f32 %v1102, %v132
    %v1109 = vmul.f32 %v1105, %v133
    %v1110 = vmul.f32 %v1102, %v134
    %v1111 = vmul.f32 %v1105, %v135
    %v1112 = vmul.f32 %v1102, %v136
    %v1113 = vmul.f32 %v1105, %v137
    %v1114 = vmul.f32 %v1102, %v138
    %v1115 = vmul.f32 %v1105, %v139
    %v1116 = vpack.c.bf16 %v1109, %v1108
    %v1117 = vpack.c.bf16 %v1111, %v1110
    %v1118 = vpack.c.bf16 %v1113, %v1112
    %v1119 = vpack.c.bf16 %v1115, %v1114
    %v1120 = vpack.c.bf16 %v1105, %v1102
    %1122 = vrot.lane.b32.xlu0 %v1120, 96
    %v1123 = vpop.permute.xlu0 %1122
    %v1125 = vsel %vm160, %v1116, 0
    %v1128 = vsel %vm160, %v1117, 0
    %v1131 = vsel %vm160, %v1118, 0
    %v1134 = vsel %vm160, %v1119, 0
    %v1137 = vsel %vm160, %v1123, 0
    %1139 = vmatprep.subr.bf16.mxu0 0
    %1140 = vmatpush1.bf16.xpose.msra.mxu0 0
    %1141 = vmatprep.subr.bf16.mxu0 0
    %1142 = vmatpush1.bf16.xpose.msra.mxu0 0
    %1143 = vmatprep.subr.bf16.mxu0 0
    %1144 = vmatpush1.bf16.xpose.msra.mxu0 0
    %1145 = vmatprep.subr.bf16.mxu0 0
    %1146 = vmatpush1.bf16.xpose.msra.mxu0 0
    %1147 = vmatprep.subr.bf16.mxu0 0
    %1148 = vmatpush1.bf16.xpose.msra.mxu0 0
    %1149 = vmatprep.subr.bf16.mxu0 0
    %1150 = vmatpush1.bf16.xpose.msra.mxu0 0
    %1151 = vmatprep.subr.bf16.mxu0 0
    %1152 = vmatpush1.bf16.xpose.msra.mxu0 0
    %1153 = vmatprep.subr.bf16.mxu0 0
    %1154 = vmatpush1.bf16.xpose.msra.mxu0 %v1137
    %1155 = vmatprep.subr.bf16.mxu0 0
    %1156 = vmatpush2.bf16.xpose.msra.mxu0 0
    %1157 = vmatprep.subr.bf16.mxu0 0
    %1158 = vmatpush2.bf16.xpose.msra.mxu0 0
    %1159 = vmatprep.subr.bf16.mxu0 0
    %1160 = vmatpush2.bf16.xpose.msra.mxu0 0
    %1161 = vmatprep.subr.bf16.mxu0 0
    %1162 = vmatpush2.bf16.xpose.msra.mxu0 0
    %1163 = vmatprep.subr.bf16.mxu0 0
    %1164 = vmatpush2.bf16.xpose.msra.mxu0 0
    %1165 = vmatprep.subr.bf16.mxu0 0
    %1166 = vmatpush2.bf16.xpose.msra.mxu0 0
    %1167 = vmatprep.subr.bf16.mxu0 0
    %1168 = vmatpush2.bf16.xpose.msra.mxu0 0
    %1169 = vmatprep.subr.bf16.mxu0 0
    %1170 = vmatpush2.bf16.xpose.msra.mxu0 0
    %1171 = vmatprep.mubr.bf16.mxu0 0
    %1172 = vmatmul.mubr.bf16.gmra.mxu0 %v1125
    %v1173 = vpop.f32.mrf.mxu0
    %v1174 = vadd.f32 %v140, %v1173
    %v1175 = vpop.f32.mrf.mxu0
    %v1176 = vpop.f32.mrf.mxu0
    %v1177 = vadd.f32 %v141, %v1176
    %v1178 = vpop.f32.mrf.mxu0
    %1179 = vmatprep.mubr.bf16.mxu0 0
    %1180 = vmatmul.mubr.bf16.gmra.mxu0 %v1128
    %v1181 = vpop.f32.mrf.mxu0
    %v1182 = vadd.f32 %v142, %v1181
    %v1183 = vpop.f32.mrf.mxu0
    %v1184 = vpop.f32.mrf.mxu0
    %v1185 = vadd.f32 %v143, %v1184
    %v1186 = vpop.f32.mrf.mxu0
    %1187 = vmatprep.mubr.bf16.mxu0 0
    %1188 = vmatmul.mubr.bf16.gmra.mxu0 %v1131
    %v1189 = vpop.f32.mrf.mxu0
    %v1190 = vadd.f32 %v144, %v1189
    %v1191 = vpop.f32.mrf.mxu0
    %v1192 = vpop.f32.mrf.mxu0
    %v1193 = vadd.f32 %v145, %v1192
    %v1194 = vpop.f32.mrf.mxu0
    %1195 = vmatprep.mubr.bf16.mxu0 0
    %1196 = vmatmul.mubr.bf16.gmra.mxu0 %v1134
    %v1197 = vpop.f32.mrf.mxu0
    %v1198 = vadd.f32 %v146, %v1197
    %v1199 = vpop.f32.mrf.mxu0
    %v1200 = vpop.f32.mrf.mxu0
    %v1201 = vadd.f32 %v147, %v1200
    %v1202 = vpop.f32.mrf.mxu0
    %1203 = vdwg.mxu0
    %v1204 = vsel %vm353, %v1174, -inf
    %1205 = vmax.xlane.f32.xlu0 %v1204
    %v1206 = vpop.xlane.xlu0 %1205
    %v1207 = vsel %vm353, %v1177, -inf
    %1208 = vmax.xlane.f32.xlu0 %v1207
    %v1209 = vpop.xlane.xlu0 %1208
    %v1210 = vsel %vm353, %v1182, -inf
    %1211 = vmax.xlane.f32.xlu0 %v1210
    %v1212 = vpop.xlane.xlu0 %1211
    %v1213 = vsel %vm353, %v1185, -inf
    %1214 = vmax.xlane.f32.xlu0 %v1213
    %v1215 = vpop.xlane.xlu0 %1214
    %v1216 = vsel %vm353, %v1190, -inf
    %1217 = vmax.xlane.f32.xlu0 %v1216
    %v1218 = vpop.xlane.xlu0 %1217
    %v1219 = vsel %vm353, %v1193, -inf
    %1220 = vmax.xlane.f32.xlu0 %v1219
    %v1221 = vpop.xlane.xlu0 %1220
    %v1222 = vsel %vm353, %v1198, -inf
    %1223 = vmax.xlane.f32.xlu0 %v1222
    %v1224 = vpop.xlane.xlu0 %1223
    %v1225 = vsel %vm353, %v1201, -inf
    %1226 = vmax.xlane.f32.xlu0 %v1225
    %v1227 = vpop.xlane.xlu0 %1226
    %v1228 = vsub.f32 %v1174, %v1206
    %v1229 = vsub.f32 %v1177, %v1209
    %v1230 = vsub.f32 %v1182, %v1212
    %v1231 = vsub.f32 %v1185, %v1215
    %v1232 = vsub.f32 %v1190, %v1218
    %v1233 = vsub.f32 %v1193, %v1221
    %v1234 = vsub.f32 %v1198, %v1224
    %v1235 = vsub.f32 %v1201, %v1227
    %v1236 = vmul.f32 %v1228, 1.442695
    %v1237 = vpow.pop %v1236
    %v1238 = vmul.f32 %v1229, 1.442695
    %v1239 = vpow.pop %v1238
    %v1240 = vmul.f32 %v1230, 1.442695
    %v1241 = vpow.pop %v1240
    %v1242 = vmul.f32 %v1231, 1.442695
    %v1243 = vpow.pop %v1242
    %v1244 = vmul.f32 %v1232, 1.442695
    %v1245 = vpow.pop %v1244
    %v1246 = vmul.f32 %v1233, 1.442695
    %v1247 = vpow.pop %v1246
    %v1248 = vmul.f32 %v1234, 1.442695
    %v1249 = vpow.pop %v1248
    %v1250 = vmul.f32 %v1235, 1.442695
    %v1251 = vpow.pop %v1250
    %v1252 = vsel %vm353, %v1237, 0.0
    %1253 = vadd.xlane.f32.xlu0 %v1252
    %v1254 = vpop.xlane.xlu0 %1253
    %v1255 = vsel %vm353, %v1239, 0.0
    %1256 = vadd.xlane.f32.xlu0 %v1255
    %v1257 = vpop.xlane.xlu0 %1256
    %v1258 = vsel %vm353, %v1241, 0.0
    %1259 = vadd.xlane.f32.xlu0 %v1258
    %v1260 = vpop.xlane.xlu0 %1259
    %v1261 = vsel %vm353, %v1243, 0.0
    %1262 = vadd.xlane.f32.xlu0 %v1261
    %v1263 = vpop.xlane.xlu0 %1262
    %v1264 = vsel %vm353, %v1245, 0.0
    %1265 = vadd.xlane.f32.xlu0 %v1264
    %v1266 = vpop.xlane.xlu0 %1265
    %v1267 = vsel %vm353, %v1247, 0.0
    %1268 = vadd.xlane.f32.xlu0 %v1267
    %v1269 = vpop.xlane.xlu0 %1268
    %v1270 = vsel %vm353, %v1249, 0.0
    %1271 = vadd.xlane.f32.xlu0 %v1270
    %v1272 = vpop.xlane.xlu0 %1271
    %v1273 = vsel %vm353, %v1251, 0.0
    %1274 = vadd.xlane.f32.xlu0 %v1273
    %v1275 = vpop.xlane.xlu0 %1274
    %v1276 = vrcp.pop %v1254
    %v1277 = vrcp.pop %v1257
    %v1278 = vrcp.pop %v1260
    %v1279 = vrcp.pop %v1263
    %v1280 = vrcp.pop %v1266
    %v1281 = vrcp.pop %v1269
    %v1282 = vrcp.pop %v1272
    %v1283 = vrcp.pop %v1275
    %v1284 = vmul.f32 %v1237, %v1276
    %v1285 = vmul.f32 %v1239, %v1277
    %v1286 = vmul.f32 %v1241, %v1278
    %v1287 = vmul.f32 %v1243, %v1279
    %v1288 = vmul.f32 %v1245, %v1280
    %v1289 = vmul.f32 %v1247, %v1281
    %v1290 = vmul.f32 %v1249, %v1282
    %v1291 = vmul.f32 %v1251, %v1283
    %v1292 = vpack.c.bf16 %v1285, %v1284
    %v1293 = vpack.c.bf16 %v1287, %v1286
    %v1294 = vpack.c.bf16 %v1289, %v1288
    %v1295 = vpack.c.bf16 %v1291, %v1290
    %1296 = vrot.lane.b32.xlu0 %v1120, 64
    %v1297 = vpop.permute.xlu0 %1296
    %v1300 = vsel %vm353, %v1292, 0
    %v1303 = vsel %vm353, %v1293, 0
    %v1306 = vsel %vm353, %v1294, 0
    %v1309 = vsel %vm353, %v1295, 0
    %1311 = vmatprep.subr.bf16.mxu0 0
    %1312 = vmatpush1.bf16.msra.mxu0 0
    %1313 = vmatprep.subr.bf16.mxu0 0
    %1314 = vmatpush1.bf16.msra.mxu0 0
    %1315 = vmatprep.subr.bf16.mxu0 0
    %1316 = vmatpush1.bf16.msra.mxu0 0
    %1317 = vmatprep.subr.bf16.mxu0 0
    %1318 = vmatpush1.bf16.msra.mxu0 0
    %1319 = vmatprep.subr.bf16.mxu0 0
    %1320 = vmatpush1.bf16.msra.mxu0 0
    %1321 = vmatprep.subr.bf16.mxu0 0
    %1322 = vmatpush1.bf16.msra.mxu0 0
    %1323 = vmatprep.subr.bf16.mxu0 0
    %1324 = vmatpush1.bf16.msra.mxu0 0
    %1325 = vmatprep.subr.bf16.mxu0 0
    %1326 = vmatpush1.bf16.msra.mxu0 %v1297
    %1327 = vmatprep.subr.bf16.mxu0 0
    %1328 = vmatpush2.bf16.msra.mxu0 0
    %1329 = vmatprep.subr.bf16.mxu0 0
    %1330 = vmatpush2.bf16.msra.mxu0 0
    %1331 = vmatprep.subr.bf16.mxu0 0
    %1332 = vmatpush2.bf16.msra.mxu0 0
    %1333 = vmatprep.subr.bf16.mxu0 0
    %1334 = vmatpush2.bf16.msra.mxu0 0
    %1335 = vmatprep.subr.bf16.mxu0 0
    %1336 = vmatpush2.bf16.msra.mxu0 0
    %1337 = vmatprep.subr.bf16.mxu0 0
    %1338 = vmatpush2.bf16.msra.mxu0 0
    %1339 = vmatprep.subr.bf16.mxu0 0
    %1340 = vmatpush2.bf16.msra.mxu0 0
    %1341 = vmatprep.subr.bf16.mxu0 0
    %1342 = vmatpush2.bf16.msra.mxu0 0
    %1343 = vmatprep.mubr.bf16.mxu0 0
    %1344 = vmatmul.mubr.bf16.gmra.mxu0 %v1300
    %v1345 = vpop.f32.mrf.mxu0
    %v1346 = vadd.f32 0.0, %v1345
    %v1347 = vpop.f32.mrf.mxu0
    %v1348 = vpop.f32.mrf.mxu0
    %v1349 = vadd.f32 0.0, %v1348
    %v1350 = vpop.f32.mrf.mxu0
    %1351 = vmatprep.mubr.bf16.mxu0 0
    %1352 = vmatmul.mubr.bf16.gmra.mxu0 %v1303
    %v1353 = vpop.f32.mrf.mxu0
    %v1354 = vadd.f32 0.0, %v1353
    %v1355 = vpop.f32.mrf.mxu0
    %v1356 = vpop.f32.mrf.mxu0
    %v1357 = vadd.f32 0.0, %v1356
    %v1358 = vpop.f32.mrf.mxu0
    %1359 = vmatprep.mubr.bf16.mxu0 0
    %1360 = vmatmul.mubr.bf16.gmra.mxu0 %v1306
    %v1361 = vpop.f32.mrf.mxu0
    %v1362 = vadd.f32 0.0, %v1361
    %v1363 = vpop.f32.mrf.mxu0
    %v1364 = vpop.f32.mrf.mxu0
    %v1365 = vadd.f32 0.0, %v1364
    %v1366 = vpop.f32.mrf.mxu0
    %1367 = vmatprep.mubr.bf16.mxu0 0
    %1368 = vmatmul.mubr.bf16.gmra.mxu0 %v1309
    %v1369 = vpop.f32.mrf.mxu0
    %v1370 = vadd.f32 0.0, %v1369
    %v1371 = vpop.f32.mrf.mxu0
    %v1372 = vpop.f32.mrf.mxu0
    %v1373 = vadd.f32 0.0, %v1372
    %v1374 = vpop.f32.mrf.mxu0
    %1375 = vdwg.mxu0
    %v1376 = vmul.f32 %v1346, %v132
    %v1377 = vmul.f32 %v1349, %v133
    %v1378 = vmul.f32 %v1354, %v134
    %v1379 = vmul.f32 %v1357, %v135
    %v1380 = vmul.f32 %v1362, %v136
    %v1381 = vmul.f32 %v1365, %v137
    %v1382 = vmul.f32 %v1370, %v138
    %v1383 = vmul.f32 %v1373, %v139
    %v1384 = vadd.f32 %v1376, %v1378
    %v1385 = vadd.f32 %v1377, %v1379
    %v1386 = vadd.f32 %v1384, %v1380
    %v1387 = vadd.f32 %v1385, %v1381
    %v1388 = vadd.f32 %v1386, %v1382
    %v1389 = vadd.f32 %v1387, %v1383
    %v1390 = vpack.c.bf16 %v1389, %v1388
    %v1391 = vlaneseq
    %v1392 = vshrl.u32 %v1391, 7
    %v1393 = vsub.s32 3, %v1392
    %v1394 = vrot.slane %v149, %v1393
    %v1396 = vsel %vm160, %v1390, 0
    %1398 = vmatprep.subr.bf16.mxu0 0
    %1399 = vmatpush1.bf16.msra.mxu0 0
    %1400 = vmatprep.subr.bf16.mxu0 0
    %1401 = vmatpush1.bf16.msra.mxu0 0
    %1402 = vmatprep.subr.bf16.mxu0 0
    %1403 = vmatpush1.bf16.msra.mxu0 0
    %1404 = vmatprep.subr.bf16.mxu0 0
    %1405 = vmatpush1.bf16.msra.mxu0 0
    %1406 = vmatprep.subr.bf16.mxu0 0
    %1407 = vmatpush1.bf16.msra.mxu0 0
    %1408 = vmatprep.subr.bf16.mxu0 0
    %1409 = vmatpush1.bf16.msra.mxu0 0
    %1410 = vmatprep.subr.bf16.mxu0 0
    %1411 = vmatpush1.bf16.msra.mxu0 %v1012
    %1412 = vmatprep.subr.bf16.mxu0 0
    %1413 = vmatpush1.bf16.msra.mxu0 %v1011
    %1414 = vmatprep.subr.bf16.mxu0 0
    %1415 = vmatpush2.bf16.msra.mxu0 0
    %1416 = vmatprep.subr.bf16.mxu0 0
    %1417 = vmatpush2.bf16.msra.mxu0 0
    %1418 = vmatprep.subr.bf16.mxu0 0
    %1419 = vmatpush2.bf16.msra.mxu0 0
    %1420 = vmatprep.subr.bf16.mxu0 0
    %1421 = vmatpush2.bf16.msra.mxu0 0
    %1422 = vmatprep.subr.bf16.mxu0 0
    %1423 = vmatpush2.bf16.msra.mxu0 0
    %1424 = vmatprep.subr.bf16.mxu0 0
    %1425 = vmatpush2.bf16.msra.mxu0 0
    %1426 = vmatprep.subr.bf16.mxu0 0
    %1427 = vmatpush2.bf16.msra.mxu0 0
    %1428 = vmatprep.subr.bf16.mxu0 0
    %1429 = vmatpush2.bf16.msra.mxu0 0
    %1430 = vmatprep.mubr.bf16.mxu0 0
    %1431 = vmatmul.mubr.bf16.gmra.mxu0 %v1396
    %v1432 = vpop.f32.mrf.mxu0
    %v1433 = vadd.f32 %v1394, %v1432
    %v1434 = vpop.f32.mrf.mxu0
    %v1435 = vpop.f32.mrf.mxu0
    %v1436 = vadd.f32 %v1394, %v1435
    %v1437 = vpop.f32.mrf.mxu0
    %1438 = vdwg.mxu0
    %v1439 = vadd.f32 %v1001, %v1433
    %v1440 = vadd.f32 %v1002, %v1436
    %v1441 = vsel %vm160, %v1439, 0.0
    %1442 = vadd.xlane.f32.xlu0 %v1441
    %v1443 = vpop.xlane.xlu0 %1442
    %v1444 = vsel %vm160, %v1440, 0.0
    %1445 = vadd.xlane.f32.xlu0 %v1444
    %v1446 = vpop.xlane.xlu0 %1445
    %v1447 = vmul.f32 %v1443, %v167
    %v1448 = vmul.f32 %v1446, %v167
    %v1449 = vsub.f32 %v1439, %v1447
    %v1450 = vsub.f32 %v1440, %v1448
    %v1451 = vmul.f32 %v1449, %v1449
    %v1452 = vmul.f32 %v1450, %v1450
    %v1453 = vsel %vm160, %v1451, 0.0
    %1454 = vadd.xlane.f32.xlu0 %v1453
    %v1455 = vpop.xlane.xlu0 %1454
    %v1456 = vsel %vm160, %v1452, 0.0
    %1457 = vadd.xlane.f32.xlu0 %v1456
    %v1458 = vpop.xlane.xlu0 %1457
    %v1459 = vmul.f32 %v1455, %v167
    %v1460 = vmul.f32 %v1458, %v167
    %v1461 = vadd.f32 %v1459, 1e-05
    %v1462 = vadd.f32 %v1460, 1e-05
    %v1463 = vrsqrt.pop %v1461
    %v1464 = vrsqrt.pop %v1462
    %v1465 = vmul.f32 %v1449, %v1463
    %v1466 = vmul.f32 %v1450, %v1464
    %v1467 = vlaneseq
    %v1468 = vshrl.u32 %v1467, 7
    %v1469 = vsub.s32 1, %v1468
    %v1470 = vrot.slane %v149, %v1469
    %v1471 = vmul.f32 %v1470, %v1465
    %v1472 = vmul.f32 %v1470, %v1466
    %v1473 = vlaneseq
    %v1474 = vshrl.u32 %v1473, 7
    %v1475 = vsub.s32 2, %v1474
    %v1476 = vrot.slane %v149, %v1475
    %v1477 = vadd.f32 %v1471, %v1476
    %v1478 = vadd.f32 %v1472, %v1476
    %v1479 = vpack.c.bf16 %v1478, %v1477
    %v1481 = vsel %vm160, %v1479, 0
    %1483 = vmatprep.subr.bf16.mxu0 0
    %1484 = vmatpush1.bf16.msra.mxu0 0
    %1485 = vmatprep.subr.bf16.mxu0 0
    %1486 = vmatpush1.bf16.msra.mxu0 0
    %1487 = vmatprep.subr.bf16.mxu0 0
    %1488 = vmatpush1.bf16.msra.mxu0 0
    %1489 = vmatprep.subr.bf16.mxu0 0
    %1490 = vmatpush1.bf16.msra.mxu0 0
    %1491 = vmatprep.subr.bf16.mxu0 0
    %1492 = vmatpush1.bf16.msra.mxu0 0
    %1493 = vmatprep.subr.bf16.mxu0 0
    %1494 = vmatpush1.bf16.msra.mxu0 0
    %1495 = vmatprep.subr.bf16.mxu0 0
    %1496 = vmatpush1.bf16.msra.mxu0 %v1061
    %1497 = vmatprep.subr.bf16.mxu0 0
    %1498 = vmatpush1.bf16.msra.mxu0 %v1060
    %1499 = vmatprep.subr.bf16.mxu0 0
    %1500 = vmatpush2.bf16.msra.mxu0 0
    %1501 = vmatprep.subr.bf16.mxu0 0
    %1502 = vmatpush2.bf16.msra.mxu0 0
    %1503 = vmatprep.subr.bf16.mxu0 0
    %1504 = vmatpush2.bf16.msra.mxu0 0
    %1505 = vmatprep.subr.bf16.mxu0 0
    %1506 = vmatpush2.bf16.msra.mxu0 0
    %1507 = vmatprep.subr.bf16.mxu0 0
    %1508 = vmatpush2.bf16.msra.mxu0 0
    %1509 = vmatprep.subr.bf16.mxu0 0
    %1510 = vmatpush2.bf16.msra.mxu0 0
    %1511 = vmatprep.subr.bf16.mxu0 0
    %1512 = vmatpush2.bf16.msra.mxu0 0
    %1513 = vmatprep.subr.bf16.mxu0 0
    %1514 = vmatpush2.bf16.msra.mxu0 0
    %1515 = vmatprep.mubr.bf16.mxu0 0
    %1516 = vmatmul.mubr.bf16.gmra.mxu0 %v1481
    %v1517 = vpop.f32.mrf.mxu0
    %v1518 = vadd.f32 0.0, %v1517
    %v1519 = vpop.f32.mrf.mxu0
    %v1520 = vpop.f32.mrf.mxu0
    %v1521 = vadd.f32 0.0, %v1520
    %v1522 = vpop.f32.mrf.mxu0
    %1523 = vdwg.mxu0
    %v1524 = vmul.f32 %v1518, %v132
    %v1525 = vmul.f32 %v1521, %v133
    %v1526 = vmul.f32 %v1518, %v134
    %v1527 = vmul.f32 %v1521, %v135
    %v1528 = vmul.f32 %v1518, %v136
    %v1529 = vmul.f32 %v1521, %v137
    %v1530 = vmul.f32 %v1518, %v138
    %v1531 = vmul.f32 %v1521, %v139
    %v1532 = vpack.c.bf16 %v1525, %v1524
    %v1533 = vpack.c.bf16 %v1527, %v1526
    %v1534 = vpack.c.bf16 %v1529, %v1528
    %v1535 = vpack.c.bf16 %v1531, %v1530
    %v1536 = vpack.c.bf16 %v1521, %v1518
    %1538 = vrot.lane.b32.xlu0 %v1536, 96
    %v1539 = vpop.permute.xlu0 %1538
    %v1541 = vsel %vm160, %v1532, 0
    %v1544 = vsel %vm160, %v1533, 0
    %v1547 = vsel %vm160, %v1534, 0
    %v1550 = vsel %vm160, %v1535, 0
    %v1553 = vsel %vm160, %v1539, 0
    %1555 = vmatprep.subr.bf16.mxu0 0
    %1556 = vmatpush1.bf16.xpose.msra.mxu0 0
    %1557 = vmatprep.subr.bf16.mxu0 0
    %1558 = vmatpush1.bf16.xpose.msra.mxu0 0
    %1559 = vmatprep.subr.bf16.mxu0 0
    %1560 = vmatpush1.bf16.xpose.msra.mxu0 0
    %1561 = vmatprep.subr.bf16.mxu0 0
    %1562 = vmatpush1.bf16.xpose.msra.mxu0 0
    %1563 = vmatprep.subr.bf16.mxu0 0
    %1564 = vmatpush1.bf16.xpose.msra.mxu0 0
    %1565 = vmatprep.subr.bf16.mxu0 0
    %1566 = vmatpush1.bf16.xpose.msra.mxu0 0
    %1567 = vmatprep.subr.bf16.mxu0 0
    %1568 = vmatpush1.bf16.xpose.msra.mxu0 0
    %1569 = vmatprep.subr.bf16.mxu0 0
    %1570 = vmatpush1.bf16.xpose.msra.mxu0 %v1553
    %1571 = vmatprep.subr.bf16.mxu0 0
    %1572 = vmatpush2.bf16.xpose.msra.mxu0 0
    %1573 = vmatprep.subr.bf16.mxu0 0
    %1574 = vmatpush2.bf16.xpose.msra.mxu0 0
    %1575 = vmatprep.subr.bf16.mxu0 0
    %1576 = vmatpush2.bf16.xpose.msra.mxu0 0
    %1577 = vmatprep.subr.bf16.mxu0 0
    %1578 = vmatpush2.bf16.xpose.msra.mxu0 0
    %1579 = vmatprep.subr.bf16.mxu0 0
    %1580 = vmatpush2.bf16.xpose.msra.mxu0 0
    %1581 = vmatprep.subr.bf16.mxu0 0
    %1582 = vmatpush2.bf16.xpose.msra.mxu0 0
    %1583 = vmatprep.subr.bf16.mxu0 0
    %1584 = vmatpush2.bf16.xpose.msra.mxu0 0
    %1585 = vmatprep.subr.bf16.mxu0 0
    %1586 = vmatpush2.bf16.xpose.msra.mxu0 0
    %1587 = vmatprep.mubr.bf16.mxu0 0
    %1588 = vmatmul.mubr.bf16.gmra.mxu0 %v1541
    %v1589 = vpop.f32.mrf.mxu0
    %v1590 = vadd.f32 %v140, %v1589
    %v1591 = vpop.f32.mrf.mxu0
    %v1592 = vpop.f32.mrf.mxu0
    %v1593 = vadd.f32 %v141, %v1592
    %v1594 = vpop.f32.mrf.mxu0
    %1595 = vmatprep.mubr.bf16.mxu0 0
    %1596 = vmatmul.mubr.bf16.gmra.mxu0 %v1544
    %v1597 = vpop.f32.mrf.mxu0
    %v1598 = vadd.f32 %v142, %v1597
    %v1599 = vpop.f32.mrf.mxu0
    %v1600 = vpop.f32.mrf.mxu0
    %v1601 = vadd.f32 %v143, %v1600
    %v1602 = vpop.f32.mrf.mxu0
    %1603 = vmatprep.mubr.bf16.mxu0 0
    %1604 = vmatmul.mubr.bf16.gmra.mxu0 %v1547
    %v1605 = vpop.f32.mrf.mxu0
    %v1606 = vadd.f32 %v144, %v1605
    %v1607 = vpop.f32.mrf.mxu0
    %v1608 = vpop.f32.mrf.mxu0
    %v1609 = vadd.f32 %v145, %v1608
    %v1610 = vpop.f32.mrf.mxu0
    %1611 = vmatprep.mubr.bf16.mxu0 0
    %1612 = vmatmul.mubr.bf16.gmra.mxu0 %v1550
    %v1613 = vpop.f32.mrf.mxu0
    %v1614 = vadd.f32 %v146, %v1613
    %v1615 = vpop.f32.mrf.mxu0
    %v1616 = vpop.f32.mrf.mxu0
    %v1617 = vadd.f32 %v147, %v1616
    %v1618 = vpop.f32.mrf.mxu0
    %1619 = vdwg.mxu0
    %v1620 = vsel %vm353, %v1590, -inf
    %1621 = vmax.xlane.f32.xlu0 %v1620
    %v1622 = vpop.xlane.xlu0 %1621
    %v1623 = vsel %vm353, %v1593, -inf
    %1624 = vmax.xlane.f32.xlu0 %v1623
    %v1625 = vpop.xlane.xlu0 %1624
    %v1626 = vsel %vm353, %v1598, -inf
    %1627 = vmax.xlane.f32.xlu0 %v1626
    %v1628 = vpop.xlane.xlu0 %1627
    %v1629 = vsel %vm353, %v1601, -inf
    %1630 = vmax.xlane.f32.xlu0 %v1629
    %v1631 = vpop.xlane.xlu0 %1630
    %v1632 = vsel %vm353, %v1606, -inf
    %1633 = vmax.xlane.f32.xlu0 %v1632
    %v1634 = vpop.xlane.xlu0 %1633
    %v1635 = vsel %vm353, %v1609, -inf
    %1636 = vmax.xlane.f32.xlu0 %v1635
    %v1637 = vpop.xlane.xlu0 %1636
    %v1638 = vsel %vm353, %v1614, -inf
    %1639 = vmax.xlane.f32.xlu0 %v1638
    %v1640 = vpop.xlane.xlu0 %1639
    %v1641 = vsel %vm353, %v1617, -inf
    %1642 = vmax.xlane.f32.xlu0 %v1641
    %v1643 = vpop.xlane.xlu0 %1642
    %v1644 = vsub.f32 %v1590, %v1622
    %v1645 = vsub.f32 %v1593, %v1625
    %v1646 = vsub.f32 %v1598, %v1628
    %v1647 = vsub.f32 %v1601, %v1631
    %v1648 = vsub.f32 %v1606, %v1634
    %v1649 = vsub.f32 %v1609, %v1637
    %v1650 = vsub.f32 %v1614, %v1640
    %v1651 = vsub.f32 %v1617, %v1643
    %v1652 = vmul.f32 %v1644, 1.442695
    %v1653 = vpow.pop %v1652
    %v1654 = vmul.f32 %v1645, 1.442695
    %v1655 = vpow.pop %v1654
    %v1656 = vmul.f32 %v1646, 1.442695
    %v1657 = vpow.pop %v1656
    %v1658 = vmul.f32 %v1647, 1.442695
    %v1659 = vpow.pop %v1658
    %v1660 = vmul.f32 %v1648, 1.442695
    %v1661 = vpow.pop %v1660
    %v1662 = vmul.f32 %v1649, 1.442695
    %v1663 = vpow.pop %v1662
    %v1664 = vmul.f32 %v1650, 1.442695
    %v1665 = vpow.pop %v1664
    %v1666 = vmul.f32 %v1651, 1.442695
    %v1667 = vpow.pop %v1666
    %v1668 = vsel %vm353, %v1653, 0.0
    %1669 = vadd.xlane.f32.xlu0 %v1668
    %v1670 = vpop.xlane.xlu0 %1669
    %v1671 = vsel %vm353, %v1655, 0.0
    %1672 = vadd.xlane.f32.xlu0 %v1671
    %v1673 = vpop.xlane.xlu0 %1672
    %v1674 = vsel %vm353, %v1657, 0.0
    %1675 = vadd.xlane.f32.xlu0 %v1674
    %v1676 = vpop.xlane.xlu0 %1675
    %v1677 = vsel %vm353, %v1659, 0.0
    %1678 = vadd.xlane.f32.xlu0 %v1677
    %v1679 = vpop.xlane.xlu0 %1678
    %v1680 = vsel %vm353, %v1661, 0.0
    %1681 = vadd.xlane.f32.xlu0 %v1680
    %v1682 = vpop.xlane.xlu0 %1681
    %v1683 = vsel %vm353, %v1663, 0.0
    %1684 = vadd.xlane.f32.xlu0 %v1683
    %v1685 = vpop.xlane.xlu0 %1684
    %v1686 = vsel %vm353, %v1665, 0.0
    %1687 = vadd.xlane.f32.xlu0 %v1686
    %v1688 = vpop.xlane.xlu0 %1687
    %v1689 = vsel %vm353, %v1667, 0.0
    %1690 = vadd.xlane.f32.xlu0 %v1689
    %v1691 = vpop.xlane.xlu0 %1690
    %v1692 = vrcp.pop %v1670
    %v1693 = vrcp.pop %v1673
    %v1694 = vrcp.pop %v1676
    %v1695 = vrcp.pop %v1679
    %v1696 = vrcp.pop %v1682
    %v1697 = vrcp.pop %v1685
    %v1698 = vrcp.pop %v1688
    %v1699 = vrcp.pop %v1691
    %v1700 = vmul.f32 %v1653, %v1692
    %v1701 = vmul.f32 %v1655, %v1693
    %v1702 = vmul.f32 %v1657, %v1694
    %v1703 = vmul.f32 %v1659, %v1695
    %v1704 = vmul.f32 %v1661, %v1696
    %v1705 = vmul.f32 %v1663, %v1697
    %v1706 = vmul.f32 %v1665, %v1698
    %v1707 = vmul.f32 %v1667, %v1699
    %v1708 = vpack.c.bf16 %v1701, %v1700
    %v1709 = vpack.c.bf16 %v1703, %v1702
    %v1710 = vpack.c.bf16 %v1705, %v1704
    %v1711 = vpack.c.bf16 %v1707, %v1706
    %1712 = vrot.lane.b32.xlu0 %v1536, 64
    %v1713 = vpop.permute.xlu0 %1712
    %v1716 = vsel %vm353, %v1708, 0
    %v1719 = vsel %vm353, %v1709, 0
    %v1722 = vsel %vm353, %v1710, 0
    %v1725 = vsel %vm353, %v1711, 0
    %1727 = vmatprep.subr.bf16.mxu0 0
    %1728 = vmatpush1.bf16.msra.mxu0 0
    %1729 = vmatprep.subr.bf16.mxu0 0
    %1730 = vmatpush1.bf16.msra.mxu0 0
    %1731 = vmatprep.subr.bf16.mxu0 0
    %1732 = vmatpush1.bf16.msra.mxu0 0
    %1733 = vmatprep.subr.bf16.mxu0 0
    %1734 = vmatpush1.bf16.msra.mxu0 0
    %1735 = vmatprep.subr.bf16.mxu0 0
    %1736 = vmatpush1.bf16.msra.mxu0 0
    %1737 = vmatprep.subr.bf16.mxu0 0
    %1738 = vmatpush1.bf16.msra.mxu0 0
    %1739 = vmatprep.subr.bf16.mxu0 0
    %1740 = vmatpush1.bf16.msra.mxu0 0
    %1741 = vmatprep.subr.bf16.mxu0 0
    %1742 = vmatpush1.bf16.msra.mxu0 %v1713
    %1743 = vmatprep.subr.bf16.mxu0 0
    %1744 = vmatpush2.bf16.msra.mxu0 0
    %1745 = vmatprep.subr.bf16.mxu0 0
    %1746 = vmatpush2.bf16.msra.mxu0 0
    %1747 = vmatprep.subr.bf16.mxu0 0
    %1748 = vmatpush2.bf16.msra.mxu0 0
    %1749 = vmatprep.subr.bf16.mxu0 0
    %1750 = vmatpush2.bf16.msra.mxu0 0
    %1751 = vmatprep.subr.bf16.mxu0 0
    %1752 = vmatpush2.bf16.msra.mxu0 0
    %1753 = vmatprep.subr.bf16.mxu0 0
    %1754 = vmatpush2.bf16.msra.mxu0 0
    %1755 = vmatprep.subr.bf16.mxu0 0
    %1756 = vmatpush2.bf16.msra.mxu0 0
    %1757 = vmatprep.subr.bf16.mxu0 0
    %1758 = vmatpush2.bf16.msra.mxu0 0
    %1759 = vmatprep.mubr.bf16.mxu0 0
    %1760 = vmatmul.mubr.bf16.gmra.mxu0 %v1716
    %v1761 = vpop.f32.mrf.mxu0
    %v1762 = vadd.f32 0.0, %v1761
    %v1763 = vpop.f32.mrf.mxu0
    %v1764 = vpop.f32.mrf.mxu0
    %v1765 = vadd.f32 0.0, %v1764
    %v1766 = vpop.f32.mrf.mxu0
    %1767 = vmatprep.mubr.bf16.mxu0 0
    %1768 = vmatmul.mubr.bf16.gmra.mxu0 %v1719
    %v1769 = vpop.f32.mrf.mxu0
    %v1770 = vadd.f32 0.0, %v1769
    %v1771 = vpop.f32.mrf.mxu0
    %v1772 = vpop.f32.mrf.mxu0
    %v1773 = vadd.f32 0.0, %v1772
    %v1774 = vpop.f32.mrf.mxu0
    %1775 = vmatprep.mubr.bf16.mxu0 0
    %1776 = vmatmul.mubr.bf16.gmra.mxu0 %v1722
    %v1777 = vpop.f32.mrf.mxu0
    %v1778 = vadd.f32 0.0, %v1777
    %v1779 = vpop.f32.mrf.mxu0
    %v1780 = vpop.f32.mrf.mxu0
    %v1781 = vadd.f32 0.0, %v1780
    %v1782 = vpop.f32.mrf.mxu0
    %1783 = vmatprep.mubr.bf16.mxu0 0
    %1784 = vmatmul.mubr.bf16.gmra.mxu0 %v1725
    %v1785 = vpop.f32.mrf.mxu0
    %v1786 = vadd.f32 0.0, %v1785
    %v1787 = vpop.f32.mrf.mxu0
    %v1788 = vpop.f32.mrf.mxu0
    %v1789 = vadd.f32 0.0, %v1788
    %v1790 = vpop.f32.mrf.mxu0
    %1791 = vdwg.mxu0
    %v1792 = vmul.f32 %v1762, %v132
    %v1793 = vmul.f32 %v1765, %v133
    %v1794 = vmul.f32 %v1770, %v134
    %v1795 = vmul.f32 %v1773, %v135
    %v1796 = vmul.f32 %v1778, %v136
    %v1797 = vmul.f32 %v1781, %v137
    %v1798 = vmul.f32 %v1786, %v138
    %v1799 = vmul.f32 %v1789, %v139
    %v1800 = vadd.f32 %v1792, %v1794
    %v1801 = vadd.f32 %v1793, %v1795
    %v1802 = vadd.f32 %v1800, %v1796
    %v1803 = vadd.f32 %v1801, %v1797
    %v1804 = vadd.f32 %v1802, %v1798
    %v1805 = vadd.f32 %v1803, %v1799
    %v1806 = vpack.c.bf16 %v1805, %v1804
    %v1808 = vsel %vm160, %v1806, 0
    %1810 = vmatprep.subr.bf16.mxu0 0
    %1811 = vmatpush1.bf16.msra.mxu0 0
    %1812 = vmatprep.subr.bf16.mxu0 0
    %1813 = vmatpush1.bf16.msra.mxu0 0
    %1814 = vmatprep.subr.bf16.mxu0 0
    %1815 = vmatpush1.bf16.msra.mxu0 0
    %1816 = vmatprep.subr.bf16.mxu0 0
    %1817 = vmatpush1.bf16.msra.mxu0 0
    %1818 = vmatprep.subr.bf16.mxu0 0
    %1819 = vmatpush1.bf16.msra.mxu0 0
    %1820 = vmatprep.subr.bf16.mxu0 0
    %1821 = vmatpush1.bf16.msra.mxu0 0
    %1822 = vmatprep.subr.bf16.mxu0 0
    %1823 = vmatpush1.bf16.msra.mxu0 %v1012
    %1824 = vmatprep.subr.bf16.mxu0 0
    %1825 = vmatpush1.bf16.msra.mxu0 %v1011
    %1826 = vmatprep.subr.bf16.mxu0 0
    %1827 = vmatpush2.bf16.msra.mxu0 0
    %1828 = vmatprep.subr.bf16.mxu0 0
    %1829 = vmatpush2.bf16.msra.mxu0 0
    %1830 = vmatprep.subr.bf16.mxu0 0
    %1831 = vmatpush2.bf16.msra.mxu0 0
    %1832 = vmatprep.subr.bf16.mxu0 0
    %1833 = vmatpush2.bf16.msra.mxu0 0
    %1834 = vmatprep.subr.bf16.mxu0 0
    %1835 = vmatpush2.bf16.msra.mxu0 0
    %1836 = vmatprep.subr.bf16.mxu0 0
    %1837 = vmatpush2.bf16.msra.mxu0 0
    %1838 = vmatprep.subr.bf16.mxu0 0
    %1839 = vmatpush2.bf16.msra.mxu0 0
    %1840 = vmatprep.subr.bf16.mxu0 0
    %1841 = vmatpush2.bf16.msra.mxu0 0
    %1842 = vmatprep.mubr.bf16.mxu0 0
    %1843 = vmatmul.mubr.bf16.gmra.mxu0 %v1808
    %v1844 = vpop.f32.mrf.mxu0
    %v1845 = vadd.f32 %v1394, %v1844
    %v1846 = vpop.f32.mrf.mxu0
    %v1847 = vpop.f32.mrf.mxu0
    %v1848 = vadd.f32 %v1394, %v1847
    %v1849 = vpop.f32.mrf.mxu0
    %1850 = vdwg.mxu0
    %v1851 = vadd.f32 %v1439, %v1845
    %v1852 = vadd.f32 %v1440, %v1848
    %v1853 = vsel %vm160, %v1851, 0.0
    %1854 = vadd.xlane.f32.xlu0 %v1853
    %v1855 = vpop.xlane.xlu0 %1854
    %v1856 = vsel %vm160, %v1852, 0.0
    %1857 = vadd.xlane.f32.xlu0 %v1856
    %v1858 = vpop.xlane.xlu0 %1857
    %v1859 = vmul.f32 %v1855, %v167
    %v1860 = vmul.f32 %v1858, %v167
    %v1861 = vsub.f32 %v1851, %v1859
    %v1862 = vsub.f32 %v1852, %v1860
    %v1863 = vmul.f32 %v1861, %v1861
    %v1864 = vmul.f32 %v1862, %v1862
    %v1865 = vsel %vm160, %v1863, 0.0
    %1866 = vadd.xlane.f32.xlu0 %v1865
    %v1867 = vpop.xlane.xlu0 %1866
    %v1868 = vsel %vm160, %v1864, 0.0
    %1869 = vadd.xlane.f32.xlu0 %v1868
    %v1870 = vpop.xlane.xlu0 %1869
    %v1871 = vmul.f32 %v1867, %v167
    %v1872 = vmul.f32 %v1870, %v167
    %v1873 = vadd.f32 %v1871, 1e-05
    %v1874 = vadd.f32 %v1872, 1e-05
    %v1875 = vrsqrt.pop %v1873
    %v1876 = vrsqrt.pop %v1874
    %v1877 = vmul.f32 %v1861, %v1875
    %v1878 = vmul.f32 %v1862, %v1876
    %v1879 = vlaneseq
    %v1880 = vshrl.u32 %v1879, 7
    %v1881 = vsub.s32 0, %v1880
    %v1882 = vrot.slane %v148, %v1881
    %v1883 = vmul.f32 %v1882, %v1877
    %v1884 = vmul.f32 %v1882, %v1878
    %v1885 = vlaneseq
    %v1886 = vshrl.u32 %v1885, 7
    %v1887 = vsub.s32 1, %v1886
    %v1888 = vrot.slane %v148, %v1887
    %v1889 = vadd.f32 %v1883, %v1888
    %v1890 = vadd.f32 %v1884, %v1888
    %v1891 = vld [vmem:[%s2 + $0x20] sm:$0xf]
    %v1892 = vld [vmem:[%s2 + $0x24] sm:$0xf]
    %v1893 = vld [vmem:[%s2 + $0x28] sm:$0xf]
    %v1894 = vld [vmem:[%s2 + $0x2c] sm:$0xf]
    %v1895 = vpack.c.bf16 %v1890, %v1889
    %v1900 = vunpack.c.l.b16 %v1891
    %v1901 = vunpack.c.l.b16 %v1892
    %v1902 = vunpack.c.l.b16 %v1893
    %v1903 = vunpack.c.l.b16 %v1894
    %v1904 = vpack.c.b16 %v1901, %v1900
    %v1905 = vpack.c.b16 %v1903, %v1902
    %v1909 = vsel %vm160, %v1895, 0
    %1911 = vmatprep.subr.bf16.mxu0 0
    %1912 = vmatpush1.bf16.msra.mxu0 0
    %1913 = vmatprep.subr.bf16.mxu0 0
    %1914 = vmatpush1.bf16.msra.mxu0 0
    %1915 = vmatprep.subr.bf16.mxu0 0
    %1916 = vmatpush1.bf16.msra.mxu0 0
    %1917 = vmatprep.subr.bf16.mxu0 0
    %1918 = vmatpush1.bf16.msra.mxu0 0
    %1919 = vmatprep.subr.bf16.mxu0 0
    %1920 = vmatpush1.bf16.msra.mxu0 0
    %1921 = vmatprep.subr.bf16.mxu0 0
    %1922 = vmatpush1.bf16.msra.mxu0 0
    %1923 = vmatprep.subr.bf16.mxu0 0
    %1924 = vmatpush1.bf16.msra.mxu0 %v1905
    %1925 = vmatprep.subr.bf16.mxu0 0
    %1926 = vmatpush1.bf16.msra.mxu0 %v1904
    %1927 = vmatprep.subr.bf16.mxu0 0
    %1928 = vmatpush2.bf16.msra.mxu0 0
    %1929 = vmatprep.subr.bf16.mxu0 0
    %1930 = vmatpush2.bf16.msra.mxu0 0
    %1931 = vmatprep.subr.bf16.mxu0 0
    %1932 = vmatpush2.bf16.msra.mxu0 0
    %1933 = vmatprep.subr.bf16.mxu0 0
    %1934 = vmatpush2.bf16.msra.mxu0 0
    %1935 = vmatprep.subr.bf16.mxu0 0
    %1936 = vmatpush2.bf16.msra.mxu0 0
    %1937 = vmatprep.subr.bf16.mxu0 0
    %1938 = vmatpush2.bf16.msra.mxu0 0
    %1939 = vmatprep.subr.bf16.mxu0 0
    %1940 = vmatpush2.bf16.msra.mxu0 0
    %1941 = vmatprep.subr.bf16.mxu0 0
    %1942 = vmatpush2.bf16.msra.mxu0 0
    %1943 = vmatprep.mubr.bf16.mxu0 0
    %1944 = vmatmul.mubr.bf16.gmra.mxu0 %v1909
    %v1945 = vpop.f32.mrf.mxu0
    %v1946 = vadd.f32 0.0, %v1945
    %v1947 = vpop.f32.mrf.mxu0
    %v1948 = vpop.f32.mrf.mxu0
    %v1949 = vadd.f32 0.0, %v1948
    %v1950 = vpop.f32.mrf.mxu0
    %1951 = vdwg.mxu0
    %1952 = vst [vmem:[#allocation2] sm:$0xff] %v1946
    %1953 = vst [vmem:[#allocation2 + $0x8] sm:$0xff] %v1949
    // Predicated region
    $region18: #{_lambda_.1} parent=1 // pred_check
      _
    $region19: #{_lambda_.1} parent=1 // pred_check_branch
      %1955 = sbr.rel (0) target = $region21
    $region20: #{_lambda_.1} parent=1 // pred_region
      %s1957 = ssub.s32 256, 256
      %1958 = vsyncadd [#allocation3], %s1957
      %s1959 = sshll.u32 [#allocation2], 4
      %s1960 = int_to_ptr.vmem [resolvable:$true] %s1959
      %1965 = dma.vmem_to_hbm [thread:$0]  %s1960, 256, %s4, [#allocation3], 128, 128, 8
    $region21: #{_lambda_.1} parent=1 // pred_fallthru
      _
    // Predicated region
    $region22: #{_lambda_.1} parent=1 // pred_check
      _
    $region23: #{_lambda_.1} parent=1 // pred_check_branch
      %1967 = sbr.rel (0) target = $region25
    $region24: #{_lambda_.1} parent=1 // pred_region
      %1968 = dma.done [#allocation3], 256
    $region25: #{_lambda_.1} parent=1 // pred_fallthru
      _
    %1969 = vsyncpa [#allocation3], 1

</llo_original>
